<compile_context>
chip_gen: v7x
topology: tpu7x:2x2x1
jax: 0.10.0
libtpu: 0.0.40
codegen_flags: <defaults>
</compile_context>

<pallas_src>
import functools

import numpy as np
import jax
import jax.numpy as jnp
from jax.experimental import pallas as pl
from jax.experimental.pallas import tpu as pltpu

BN_EPS = 1e-5


def up_doubleconv_kernel(x_ref, p_ref, gamma_ref, beta_ref,
                         w1_ref, b1_ref, a1_ref,
                         w2_ref, b2_ref, a2_ref, a3_ref,
                         o_ref, *, H, W, fuse_a23):
    R = x_ref.shape[0]                                 # R = N*H (static)
    x = x_ref[...]                                     # (N*H, W*Cin) lane-dense f32

    # ---- BatchNorm2d (batch stats) folded into per-lane scale/shift ----
    inv_cnt = 1.0 / float(R * W)                       # 1 / (N*H*W)
    s = jnp.sum(x, axis=0, keepdims=True)              # (1, W*Cin)
    ss = jnp.sum(x * x, axis=0, keepdims=True)         # (1, W*Cin)
    # One MXU pass: P sums the W lane-copies of each channel and re-broadcasts.
    mom = jnp.concatenate([s, ss], axis=0)             # (2, W*Cin)
    mom_l = jnp.dot(mom, p_ref[...],
                    preferred_element_type=jnp.float32) * inv_cnt
    mean_l = mom_l[0:1, :]                             # E[x]  per lane
    var_l = mom_l[1:2, :] - mean_l * mean_l            # biased variance (as PyTorch)
    scale_l = gamma_ref[...] * jax.lax.rsqrt(var_l + BN_EPS)
    shift_l = beta_ref[...] - mean_l * scale_l
    xn = x * scale_l + shift_l                         # (N*H, W*Cin) f32

    # ---- image-boundary row masks (shared by both convs) ----
    hh = jax.lax.broadcasted_iota(jnp.int32, (R, 1), 0) % H
    ok_up = hh > 0              # row h-1 exists inside the same image
    ok_dn = hh < (H - 1)        # row h+1 exists inside the same image

    def conv3x3(z, w_ref):
        # K-stacked band matmul: LHS = [x(h-1) | x(h) | x(h+1)] in bf16,
        # RHS = (3*K_in, W*Cout) bf16 band weight (dx taps + horizontal zero
        # padding folded in on the host). One MXU matmul per conv; the roll
        # wrap-around rows are zeroed by the image-boundary masks.
        z_up = jnp.where(ok_up, pltpu.roll(z, 1, 0), 0.0)       # x[h-1] at row h
        z_dn = jnp.where(ok_dn, pltpu.roll(z, R - 1, 0), 0.0)   # x[h+1] at row h
        lhs = jnp.concatenate([z_up.astype(jnp.bfloat16),
                               z.astype(jnp.bfloat16),
                               z_dn.astype(jnp.bfloat16)], axis=1)
        return jnp.dot(lhs, w_ref[...], preferred_element_type=jnp.float32)

    # ---- Conv #1 + PReLU ----
    h1 = conv3x3(xn, w1_ref) + b1_ref[...]
    h1 = jnp.where(h1 >= 0, h1, a1_ref[...] * h1)

    # ---- Conv #2 + PReLU + PReLU ----
    h2 = conv3x3(h1, w2_ref) + b2_ref[...]
    if fuse_a23:
        # a2_ref holds a2*a3 (exact because a2 >= 0 elementwise).
        h2 = jnp.where(h2 >= 0, h2, a2_ref[...] * h2)
    else:
        h2 = jnp.where(h2 >= 0, h2, a2_ref[...] * h2)
        h2 = jnp.where(h2 >= 0, h2, a3_ref[...] * h2)

    o_ref[...] = h2                                    # (N*H, W*Cout), lane-dense store


# ------------------------------- wrapper helpers -------------------------------
def pixel_shuffle_nchw(x, r):
    N, C, H, W = x.shape
    c = C // (r * r)
    x = x.reshape(N, c, r, r, H, W)
    x = x.transpose(0, 1, 4, 2, 5, 3)
    return x.reshape(N, c, H * r, W * r)


def _band_weights_stacked(w_oihw, W, dtype=jnp.bfloat16):
    """(Cout, Cin, 3, 3) OIHW conv weight -> (3*W*Cin, W*Cout) K-stacked band.

    band[ky][w_in*Cin + ci, w_out*Cout + co] = w[co, ci, ky, w_in - w_out + 1]
    (zero when |w_in - w_out| > 1); the three ky blocks are stacked along K so
    the whole padding=1 3x3 conv is one matmul against the K-stacked LHS
    [x(h-1) | x(h) | x(h+1)].
    """
    w = np.asarray(w_oihw, np.float32)
    Cout, Cin = w.shape[0], w.shape[1]
    band = np.zeros((3, W * Cin, W * Cout), np.float32)
    for ky in range(3):
        for w_out in range(W):
            for kx in range(3):
                w_in = w_out + kx - 1
                if 0 <= w_in < W:
                    band[ky,
                         w_in * Cin:(w_in + 1) * Cin,
                         w_out * Cout:(w_out + 1) * Cout] = w[:, :, ky, kx].T
    return jnp.asarray(band.reshape(3 * W * Cin, W * Cout), dtype)


def _channel_sum_matrix(W, C):
    # P[i, j] = 1 iff lanes i and j hold the same channel (i % C == j % C).
    i = np.arange(W * C)
    return jnp.asarray((i[:, None] % C == i[None, :] % C).astype(np.float32))


def _lane_tile(v, W):
    # per-channel vector (C,) -> lane-folded row (1, W*C), w-major / c-minor.
    return jnp.tile(jnp.asarray(v, jnp.float32), (W,)).reshape(1, -1)


def prepare_params(pt, W):
    a2 = np.asarray(pt["a2"], np.float32)
    a3 = np.asarray(pt["a3"], np.float32)
    fuse_a23 = bool(np.all(a2 >= 0.0))          # fold is exact only when a2 >= 0
    a2_eff = a2 * a3 if fuse_a23 else a2
    return {
        "P":        _channel_sum_matrix(W, pt["w1"].shape[1]),
        "gamma":    _lane_tile(pt["gamma"], W),
        "beta":     _lane_tile(pt["beta"], W),
        "w1":       _band_weights_stacked(pt["w1"], W),   # bf16, K-stacked
        "b1":       _lane_tile(pt["b1"], W),
        "a1":       _lane_tile(pt["a1"], W),
        "w2":       _band_weights_stacked(pt["w2"], W),   # bf16, K-stacked
        "b2":       _lane_tile(pt["b2"], W),
        "a2":       _lane_tile(a2_eff, W),
        "a3":       _lane_tile(a3, W),
        "fuse_a23": fuse_a23,
    }


def up_forward(x1, x2, params, upscale_factor=2):
    """x1, x2 in NCHW (PyTorch convention). Returns NCHW output."""
    # TODO(synk): PixelShuffle / concat / layout folding are left to XLA here; a
    # fully fused variant would take raw x1/x2 refs and build the folded slab in-kernel.
    x1u = pixel_shuffle_nchw(x1, upscale_factor)
    x = jnp.concatenate([x2, x1u], axis=1)                     # (N, Cin, H, W)
    N, Cin, H, W = x.shape
    Cout = params["b1"].shape[1] // W

    # lane-dense slab: (N*H, W*Cin)
    x2d = jnp.transpose(x, (0, 2, 3, 1)).reshape(N * H, W * Cin)

    vmem = pl.BlockSpec(memory_space=pltpu.MemorySpace.VMEM)
    out2d = pl.pallas_call(
        functools.partial(up_doubleconv_kernel, H=H, W=W,
                          fuse_a23=params["fuse_a23"]),
        out_shape=jax.ShapeDtypeStruct((N * H, W * Cout), jnp.float32),
        in_specs=[vmem] * 11,
        out_specs=vmem,
        compiler_params=pltpu.CompilerParams(vmem_limit_bytes=32 * 1024 * 1024),
    )(x2d, params["P"], params["gamma"], params["beta"],
      params["w1"], params["b1"], params["a1"],
      params["w2"], params["b2"], params["a2"], params["a3"])

    # TODO(synk): for realistic U-Net sizes, add a parallel grid axis over H
    # row-bands (1-row halo, BN stats in a separate pass) so both v7x TensorCores
    # are used and M reaches >=256; re-budget the O(W^2) band weights against
    # v7x's 64 MiB VMEM (fall back to a K=3*Cin dx-im2col for large W). At this
    # toy size (M = N*H = 32) a single resident invocation is fastest.
    out = out2d.reshape(N, H, W, Cout)
    return jnp.transpose(out, (0, 3, 1, 2))                    # back to NCHW


# ----------------------------- pure-JAX reference -----------------------------
def ref_forward(x1, x2, pt, upscale_factor=2):
    x1u = pixel_shuffle_nchw(x1, upscale_factor)
    x = jnp.concatenate([x2, x1u], axis=1)
    mean = jnp.mean(x, axis=(0, 2, 3), keepdims=True)
    var = jnp.mean((x - mean) ** 2, axis=(0, 2, 3), keepdims=True)
    xn = (x - mean) / jnp.sqrt(var + BN_EPS)
    xn = xn * pt["gamma"][None, :, None, None] + pt["beta"][None, :, None, None]

    def conv(z, w, b):
        y = jax.lax.conv_general_dilated(
            z, w, (1, 1), ((1, 1), (1, 1)),
            dimension_numbers=("NCHW", "OIHW", "NCHW"))
        return y + b[None, :, None, None]

    def prelu(z, a):
        return jnp.where(z >= 0, z, a[None, :, None, None] * z)

    h = prelu(conv(xn, pt["w1"], pt["b1"]), pt["a1"])
    h = prelu(conv(h, pt["w2"], pt["b2"]), pt["a2"])
    h = prelu(h, pt["a3"])
    return h


if __name__ == "__main__":
    key = jax.random.PRNGKey(0)
    ks = jax.random.split(key, 12)

    # Up(in_channels=8, out_channels=16, upscale_factor=2)
    # x1: (2, 16, 8, 8) --PixelShuffle(2)--> (2, 4, 16, 16); x2: (2, 4, 16, 16)
    # concat channels -> in_channels = 8
    Cin, Cout, r = 8, 16, 2
    x1 = jax.random.normal(ks[0], (2, 16, 8, 8), jnp.float32)
    x2 = jax.random.normal(ks[1], (2, 4, 16, 16), jnp.float32)
    W = x2.shape[-1]

    # PyTorch-layout parameters (deterministic synthetic init)
    pt = {
        "gamma": jax.random.uniform(ks[2], (Cin,), jnp.float32, 0.5, 1.5),
        "beta":  jax.random.normal(ks[3], (Cin,), jnp.float32) * 0.1,
        "w1":    jax.random.normal(ks[4], (Cout, Cin, 3, 3), jnp.float32) * 0.1,
        "b1":    jax.random.normal(ks[5], (Cout,), jnp.float32) * 0.1,
        "a1":    jax.random.uniform(ks[6], (Cout,), jnp.float32, 0.1, 0.4),
        "w2":    jax.random.normal(ks[7], (Cout, Cout, 3, 3), jnp.float32) * 0.1,
        "b2":    jax.random.normal(ks[8], (Cout,), jnp.float32) * 0.1,
        "a2":    jax.random.uniform(ks[9], (Cout,), jnp.float32, 0.1, 0.4),
        "a3":    jax.random.uniform(ks[10], (Cout,), jnp.float32, 0.1, 0.4),
    }

    params = prepare_params(pt, W)

    out = up_forward(x1, x2, params, upscale_factor=r)
    out = jax.block_until_ready(out)

    ref = jax.block_until_ready(ref_forward(x1, x2, pt, upscale_factor=r))
    assert out.shape == (2, Cout, 16, 16), out.shape
    # bf16 MXU inputs (f32 accumulation) -> looser tolerance vs the f32 reference.
    err = float(jnp.max(jnp.abs(out - ref)))
    assert jnp.allclose(out, ref, rtol=2e-2, atol=2e-2), err

    print("KERNEL_OK")
</pallas_src>

<mosaic_0001>
module attributes {stable_mosaic.version = 11 : i64} {
  func.func @up_doubleconv_kernel(%arg0: memref<32x128xf32, #tpu.memory_space<vmem>>, %arg1: memref<128x128xf32, #tpu.memory_space<vmem>>, %arg2: memref<1x128xf32, #tpu.memory_space<vmem>>, %arg3: memref<1x128xf32, #tpu.memory_space<vmem>>, %arg4: memref<384x256xbf16, #tpu.memory_space<vmem>>, %arg5: memref<1x256xf32, #tpu.memory_space<vmem>>, %arg6: memref<1x256xf32, #tpu.memory_space<vmem>>, %arg7: memref<768x256xbf16, #tpu.memory_space<vmem>>, %arg8: memref<1x256xf32, #tpu.memory_space<vmem>>, %arg9: memref<1x256xf32, #tpu.memory_space<vmem>>, %arg10: memref<1x256xf32, #tpu.memory_space<vmem>>, %arg11: memref<32x256xf32, #tpu.memory_space<vmem>>) attributes {dimension_semantics = [], scalar_prefetch = 0 : i64, scratch_operands = 0 : i64, tpu.core_type = #tpu.core_type<tc>} {
    %c0 = arith.constant 0 : index
    %c0_0 = arith.constant 0 : index
    %0 = vector.load %arg0[%c0, %c0_0] : memref<32x128xf32, #tpu.memory_space<vmem>>, vector<32x128xf32>
    %cst = arith.constant dense<0.000000e+00> : vector<128xf32>
    %1 = vector.multi_reduction <add>, %0, %cst [0] : vector<32x128xf32> to vector<128xf32>
    %2 = vector.shape_cast %1 : vector<128xf32> to vector<1x128xf32>
    %3 = arith.mulf %0, %0 : vector<32x128xf32>
    %cst_1 = arith.constant dense<0.000000e+00> : vector<128xf32>
    %4 = vector.multi_reduction <add>, %3, %cst_1 [0] : vector<32x128xf32> to vector<128xf32>
    %5 = vector.shape_cast %4 : vector<128xf32> to vector<1x128xf32>
    %6 = tpu.concatenate %2, %5 in 0 : vector<1x128xf32>, vector<1x128xf32> -> vector<2x128xf32>
    %c0_2 = arith.constant 0 : index
    %c0_3 = arith.constant 0 : index
    %7 = vector.load %arg1[%c0_2, %c0_3] : memref<128x128xf32, #tpu.memory_space<vmem>>, vector<128x128xf32>
    %cst_4 = arith.constant dense<0.000000e+00> : vector<2x128xf32>
    %8 = tpu.matmul %6, %7, %cst_4 {dimension_numbers = #tpu.dot_dimension_numbers<[1], [0], [0], [1], [0, 0, 1, 1], [], []>} : vector<2x128xf32>, vector<128x128xf32>, vector<2x128xf32> -> vector<2x128xf32>
    %cst_5 = arith.constant 0.001953125 : f32
    %9 = vector.broadcast %cst_5 : f32 to vector<2x128xf32>
    %10 = arith.mulf %8, %9 : vector<2x128xf32>
    %11 = vector.extract_strided_slice %10 {offsets = [0, 0], sizes = [1, 128], strides = [1, 1]} : vector<2x128xf32> to vector<1x128xf32>
    %12 = vector.extract_strided_slice %10 {offsets = [1, 0], sizes = [1, 128], strides = [1, 1]} : vector<2x128xf32> to vector<1x128xf32>
    %13 = arith.mulf %11, %11 : vector<1x128xf32>
    %14 = arith.subf %12, %13 : vector<1x128xf32>
    %c0_6 = arith.constant 0 : index
    %c0_7 = arith.constant 0 : index
    %15 = vector.load %arg2[%c0_6, %c0_7] : memref<1x128xf32, #tpu.memory_space<vmem>>, vector<1x128xf32>
    %cst_8 = arith.constant 9.99999974E-6 : f32
    %16 = vector.broadcast %cst_8 : f32 to vector<1x128xf32>
    %17 = arith.addf %14, %16 : vector<1x128xf32>
    %18 = math.rsqrt %17 : vector<1x128xf32>
    %19 = arith.mulf %15, %18 : vector<1x128xf32>
    %c0_9 = arith.constant 0 : index
    %c0_10 = arith.constant 0 : index
    %20 = vector.load %arg3[%c0_9, %c0_10] : memref<1x128xf32, #tpu.memory_space<vmem>>, vector<1x128xf32>
    %21 = arith.mulf %11, %19 : vector<1x128xf32>
    %22 = arith.subf %20, %21 : vector<1x128xf32>
    %23 = vector.broadcast %19 : vector<1x128xf32> to vector<32x128xf32>
    %24 = arith.mulf %0, %23 : vector<32x128xf32>
    %25 = vector.broadcast %22 : vector<1x128xf32> to vector<32x128xf32>
    %26 = arith.addf %24, %25 : vector<32x128xf32>
    %27 = tpu.iota {dimensions = array<i32: 0>} : vector<32x1xi32>
    %c16_i32 = arith.constant 16 : i32
    %c0_i32 = arith.constant 0 : i32
    %28 = arith.cmpi eq, %c16_i32, %c0_i32 : i32
    %c1_i32 = arith.constant 1 : i32
    %29 = arith.select %28, %c1_i32, %c16_i32 : i32
    %30 = vector.broadcast %29 : i32 to vector<32x1xi32>
    %31 = arith.remsi %27, %30 : vector<32x1xi32>
    %c0_i32_11 = arith.constant 0 : i32
    %32 = vector.broadcast %c0_i32_11 : i32 to vector<32x1xi32>
    %33 = arith.cmpi ne, %31, %32 : vector<32x1xi32>
    %c0_i32_12 = arith.constant 0 : i32
    %34 = vector.broadcast %c0_i32_12 : i32 to vector<32x1xi32>
    %35 = arith.cmpi slt, %31, %34 : vector<32x1xi32>
    %c0_i32_13 = arith.constant 0 : i32
    %36 = arith.cmpi slt, %29, %c0_i32_13 : i32
    %37 = vector.broadcast %36 : i1 to vector<32x1xi1>
    %38 = vector.broadcast %37 : vector<32x1xi1> to vector<32x1xi1>
    %39 = arith.xori %35, %38 : vector<32x1xi1>
    %40 = arith.andi %39, %33 : vector<32x1xi1>
    %41 = vector.broadcast %29 : i32 to vector<32x1xi32>
    %42 = arith.addi %31, %41 : vector<32x1xi32>
    %43 = arith.select %40, %42, %31 : vector<32x1xi1>, vector<32x1xi32>
    %c0_i32_14 = arith.constant 0 : i32
    %44 = vector.broadcast %c0_i32_14 : i32 to vector<32x1xi32>
    %45 = arith.cmpi sgt, %43, %44 : vector<32x1xi32>
    %c15_i32 = arith.constant 15 : i32
    %46 = vector.broadcast %c15_i32 : i32 to vector<32x1xi32>
    %47 = arith.cmpi slt, %43, %46 : vector<32x1xi32>
    %c1_i32_15 = arith.constant 1 : i32
    %48 = tpu.dynamic_rotate %26 by %c1_i32_15 dim 0 : vector<32x128xf32>, i32 -> vector<32x128xf32>
    %cst_16 = arith.constant 0.000000e+00 : f32
    %49 = vector.shape_cast %45 : vector<32x1xi1> to vector<32x1xi1>
    %50 = vector.broadcast %49 : vector<32x1xi1> to vector<32x128xi1>
    %51 = vector.broadcast %cst_16 : f32 to vector<32x128xf32>
    %52 = arith.select %50, %48, %51 : vector<32x128xi1>, vector<32x128xf32>
    %c31_i32 = arith.constant 31 : i32
    %53 = tpu.dynamic_rotate %26 by %c31_i32 dim 0 : vector<32x128xf32>, i32 -> vector<32x128xf32>
    %cst_17 = arith.constant 0.000000e+00 : f32
    %54 = vector.shape_cast %47 : vector<32x1xi1> to vector<32x1xi1>
    %55 = vector.broadcast %54 : vector<32x1xi1> to vector<32x128xi1>
    %56 = vector.broadcast %cst_17 : f32 to vector<32x128xf32>
    %57 = arith.select %55, %53, %56 : vector<32x128xi1>, vector<32x128xf32>
    %58 = arith.truncf %52 : vector<32x128xf32> to vector<32x128xbf16>
    %59 = arith.truncf %26 : vector<32x128xf32> to vector<32x128xbf16>
    %60 = arith.truncf %57 : vector<32x128xf32> to vector<32x128xbf16>
    %61 = tpu.concatenate %58, %59, %60 in 1 : vector<32x128xbf16>, vector<32x128xbf16>, vector<32x128xbf16> -> vector<32x384xbf16>
    %c0_18 = arith.constant 0 : index
    %c0_19 = arith.constant 0 : index
    %62 = vector.load %arg4[%c0_18, %c0_19] : memref<384x256xbf16, #tpu.memory_space<vmem>>, vector<384x256xbf16>
    %cst_20 = arith.constant dense<0.000000e+00> : vector<32x256xf32>
    %63 = tpu.matmul %61, %62, %cst_20 {dimension_numbers = #tpu.dot_dimension_numbers<[1], [0], [0], [1], [0, 0, 1, 1], [], []>} : vector<32x384xbf16>, vector<384x256xbf16>, vector<32x256xf32> -> vector<32x256xf32>
    %c0_21 = arith.constant 0 : index
    %c0_22 = arith.constant 0 : index
    %64 = vector.load %arg5[%c0_21, %c0_22] : memref<1x256xf32, #tpu.memory_space<vmem>>, vector<1x256xf32>
    %65 = vector.broadcast %64 : vector<1x256xf32> to vector<32x256xf32>
    %66 = arith.addf %63, %65 : vector<32x256xf32>
    %cst_23 = arith.constant 0.000000e+00 : f32
    %67 = vector.broadcast %cst_23 : f32 to vector<32x256xf32>
    %68 = arith.cmpf oge, %66, %67 : vector<32x256xf32>
    %c0_24 = arith.constant 0 : index
    %c0_25 = arith.constant 0 : index
    %69 = vector.load %arg6[%c0_24, %c0_25] : memref<1x256xf32, #tpu.memory_space<vmem>>, vector<1x256xf32>
    %70 = vector.broadcast %69 : vector<1x256xf32> to vector<32x256xf32>
    %71 = arith.mulf %70, %66 : vector<32x256xf32>
    %72 = arith.select %68, %66, %71 : vector<32x256xi1>, vector<32x256xf32>
    %c1_i32_26 = arith.constant 1 : i32
    %73 = tpu.dynamic_rotate %72 by %c1_i32_26 dim 0 : vector<32x256xf32>, i32 -> vector<32x256xf32>
    %cst_27 = arith.constant 0.000000e+00 : f32
    %74 = vector.shape_cast %45 : vector<32x1xi1> to vector<32x1xi1>
    %75 = vector.broadcast %74 : vector<32x1xi1> to vector<32x256xi1>
    %76 = vector.broadcast %cst_27 : f32 to vector<32x256xf32>
    %77 = arith.select %75, %73, %76 : vector<32x256xi1>, vector<32x256xf32>
    %c31_i32_28 = arith.constant 31 : i32
    %78 = tpu.dynamic_rotate %72 by %c31_i32_28 dim 0 : vector<32x256xf32>, i32 -> vector<32x256xf32>
    %cst_29 = arith.constant 0.000000e+00 : f32
    %79 = vector.shape_cast %47 : vector<32x1xi1> to vector<32x1xi1>
    %80 = vector.broadcast %79 : vector<32x1xi1> to vector<32x256xi1>
    %81 = vector.broadcast %cst_29 : f32 to vector<32x256xf32>
    %82 = arith.select %80, %78, %81 : vector<32x256xi1>, vector<32x256xf32>
    %83 = arith.truncf %77 : vector<32x256xf32> to vector<32x256xbf16>
    %84 = arith.truncf %72 : vector<32x256xf32> to vector<32x256xbf16>
    %85 = arith.truncf %82 : vector<32x256xf32> to vector<32x256xbf16>
    %86 = tpu.concatenate %83, %84, %85 in 1 : vector<32x256xbf16>, vector<32x256xbf16>, vector<32x256xbf16> -> vector<32x768xbf16>
    %c0_30 = arith.constant 0 : index
    %c0_31 = arith.constant 0 : index
    %87 = vector.load %arg7[%c0_30, %c0_31] : memref<768x256xbf16, #tpu.memory_space<vmem>>, vector<768x256xbf16>
    %cst_32 = arith.constant dense<0.000000e+00> : vector<32x256xf32>
    %88 = tpu.matmul %86, %87, %cst_32 {dimension_numbers = #tpu.dot_dimension_numbers<[1], [0], [0], [1], [0, 0, 1, 1], [], []>} : vector<32x768xbf16>, vector<768x256xbf16>, vector<32x256xf32> -> vector<32x256xf32>
    %c0_33 = arith.constant 0 : index
    %c0_34 = arith.constant 0 : index
    %89 = vector.load %arg8[%c0_33, %c0_34] : memref<1x256xf32, #tpu.memory_space<vmem>>, vector<1x256xf32>
    %90 = vector.broadcast %89 : vector<1x256xf32> to vector<32x256xf32>
    %91 = arith.addf %88, %90 : vector<32x256xf32>
    %cst_35 = arith.constant 0.000000e+00 : f32
    %92 = vector.broadcast %cst_35 : f32 to vector<32x256xf32>
    %93 = arith.cmpf oge, %91, %92 : vector<32x256xf32>
    %c0_36 = arith.constant 0 : index
    %c0_37 = arith.constant 0 : index
    %94 = vector.load %arg9[%c0_36, %c0_37] : memref<1x256xf32, #tpu.memory_space<vmem>>, vector<1x256xf32>
    %95 = vector.broadcast %94 : vector<1x256xf32> to vector<32x256xf32>
    %96 = arith.mulf %95, %91 : vector<32x256xf32>
    %97 = arith.select %93, %91, %96 : vector<32x256xi1>, vector<32x256xf32>
    %c0_38 = arith.constant 0 : index
    %c0_39 = arith.constant 0 : index
    %98 = vector.load %arg11[%c0_38, %c0_39] : memref<32x256xf32, #tpu.memory_space<vmem>>, vector<32x256xf32>
    tpu.vector_store %arg11[%c0_38, %c0_39], %97 {strides = array<i32>} : memref<32x256xf32, #tpu.memory_space<vmem>>, vector<32x256xf32>,
    return
  }
}

</mosaic_0001>

<llo_original>
// kernel: tpu_custom_call.1
$region0: #{tpu_custom_call.1}
  #allocation0 [shape = 'u32[]', space=smem, size = 0x4, offset = 0x4, fixed_abs, tag = 'smem constant byte address 0x4 - core index']
  #allocation1 [shape = 'u32[144,128]{1,0:T(1,128)}', space=vmem, size = 0x12000, scoped, tag = 'internal scratch']
  %s0 = inlined_call_operand.hbm [shape: f32[32,128], index: 0, kind: input, shape index: {}]
  %s1 = inlined_call_operand.hbm [shape: f32[128,128], index: 1, kind: input, shape index: {}]
  %s2 = inlined_call_operand.vmem [shape: f32[1,128], index: 2, kind: input, shape index: {}]
  %s3 = inlined_call_operand.hbm [shape: f32[1,128], index: 3, kind: input, shape index: {}]
  %s4 = inlined_call_operand.hbm [shape: bf16[384,256], index: 4, kind: input, shape index: {}]
  %s5 = inlined_call_operand.vmem [shape: f32[1,256], index: 5, kind: input, shape index: {}]
  %s6 = inlined_call_operand.vmem [shape: f32[1,256], index: 6, kind: input, shape index: {}]
  %s7 = inlined_call_operand.hbm [shape: bf16[768,256], index: 7, kind: input, shape index: {}]
  %s8 = inlined_call_operand.vmem [shape: f32[1,256], index: 8, kind: input, shape index: {}]
  %s9 = inlined_call_operand.vmem [shape: f32[1,256], index: 9, kind: input, shape index: {}]
  %s10 = inlined_call_operand.vmem [shape: f32[1,256], index: 10, kind: input, shape index: {}]
  %s11 = inlined_call_operand.hbm [shape: f32[32,256], index: 11, kind: output, shape index: {}]
  %s12 = sld [smem:[#allocation0]]
  $region74: #{tpu_custom_call.1} parent=0
    _
  %s14 = ssub.s32 1, %s12
  %s15 = scalar_select 0, %s14, %s12
  $region1: #{tpu_custom_call.1} parent=0
    #allocation2 [shape = 'u8[16384]{0}', space=vmem, size = 0x4000, scoped, tag = 'input window, operand 0, single buffered']
    #allocation3 [shape = 's32[1]{0}', space=sflag, size = 0x4, scoped, tag = 'scoped memory for tpu_custom_call.1']
    #allocation4 [shape = 's32[1]{0}', space=sflag, size = 0x4, scoped, tag = 'scoped memory for tpu_custom_call.1']
    #allocation5 [shape = 'u8[65536]{0}', space=vmem, size = 0x10000, scoped, tag = 'input window, operand 1, single buffered']
    #allocation6 [shape = 's32[1]{0}', space=sflag, size = 0x4, scoped, tag = 'scoped memory for tpu_custom_call.1']
    #allocation7 [shape = 'u8[512]{0}', space=vmem, size = 0x400, scoped, tag = 'input window, operand 3, single buffered']
    #allocation8 [shape = 'u8[196608]{0}', space=vmem, size = 0x30000, scoped, tag = 'input window, operand 4, single buffered']
    #allocation9 [shape = 's32[1]{0}', space=sflag, size = 0x4, scoped, tag = 'scoped memory for tpu_custom_call.1']
    #allocation10 [shape = 'u8[393216]{0}', space=vmem, size = 0x60000, scoped, tag = 'input window, operand 7, single buffered']
    #allocation11 [shape = 'u8[32768]{0}', space=vmem, size = 0x8000, scoped, tag = 'output window, operand 0, single buffered']
    %16 = vsyncpa [#allocation3], 0
    %17 = vsyncpa [#allocation6], 0
    %18 = vsyncpa [#allocation9], 0
    %19 = vsyncpa [#allocation4], 0
    // Predicated region
    $region2: #{tpu_custom_call.1} parent=1 // pred_check
      _
    $region3: #{tpu_custom_call.1} parent=1 // pred_check_branch
      %21 = sbr.rel (0) target = $region5
    $region4: #{tpu_custom_call.1} parent=1 // pred_region
      %s23 = ssub.s32 512, 512
      %24 = vsyncadd [#allocation3], %s23
      %s25 = sshll.u32 [#allocation2], 4
      %s26 = int_to_ptr.vmem [resolvable:$true] %s25
      %31 = dma.hbm_to_vmem [thread:$0]  %s0, 512, %s26, [#allocation3], 128, 128, 8
    $region5: #{tpu_custom_call.1} parent=1 // pred_fallthru
      _
    // Predicated region
    $region6: #{tpu_custom_call.1} parent=1 // pred_check
      _
    $region7: #{tpu_custom_call.1} parent=1 // pred_check_branch
      %33 = sbr.rel (0) target = $region9
    $region8: #{tpu_custom_call.1} parent=1 // pred_region
      %s35 = ssub.s32 2048, 2048
      %36 = vsyncadd [#allocation6], %s35
      %s37 = sshll.u32 [#allocation5], 4
      %s38 = int_to_ptr.vmem [resolvable:$true] %s37
      %43 = dma.hbm_to_vmem [thread:$0]  %s1, 2048, %s38, [#allocation6], 128, 128, 8
    $region9: #{tpu_custom_call.1} parent=1 // pred_fallthru
      _
    // Predicated region
    $region10: #{tpu_custom_call.1} parent=1 // pred_check
      _
    $region11: #{tpu_custom_call.1} parent=1 // pred_check_branch
      %45 = sbr.rel (0) target = $region13
    $region12: #{tpu_custom_call.1} parent=1 // pred_region
      _
    $region13: #{tpu_custom_call.1} parent=1 // pred_fallthru
      _
    // Predicated region
    $region14: #{tpu_custom_call.1} parent=1 // pred_check
      _
    $region15: #{tpu_custom_call.1} parent=1 // pred_check_branch
      %47 = sbr.rel (0) target = $region17
    $region16: #{tpu_custom_call.1} parent=1 // pred_region
      %s49 = ssub.s32 16, 16
      %50 = vsyncadd [#allocation6], %s49
      %s52 = sshll.u32 [#allocation7], 4
      %s53 = int_to_ptr.vmem [resolvable:$true] %s52
      %55 = dma.hbm_to_vmem [thread:$0]  %s3, 16, %s53, [#allocation6]
    $region17: #{tpu_custom_call.1} parent=1 // pred_fallthru
      _
    // Predicated region
    $region18: #{tpu_custom_call.1} parent=1 // pred_check
      _
    $region19: #{tpu_custom_call.1} parent=1 // pred_check_branch
      %57 = sbr.rel (0) target = $region21
    $region20: #{tpu_custom_call.1} parent=1 // pred_region
      %s59 = ssub.s32 6144, 6144
      %60 = vsyncadd [#allocation9], %s59
      %s61 = sshll.u32 [#allocation8], 4
      %s62 = int_to_ptr.vmem [resolvable:$true] %s61
      %67 = dma.hbm_to_vmem [thread:$0]  %s4, 6144, %s62, [#allocation9], 128, 128, 8
    $region21: #{tpu_custom_call.1} parent=1 // pred_fallthru
      _
    // Predicated region
    $region22: #{tpu_custom_call.1} parent=1 // pred_check
      _
    $region23: #{tpu_custom_call.1} parent=1 // pred_check_branch
      %69 = sbr.rel (0) target = $region25
    $region24: #{tpu_custom_call.1} parent=1 // pred_region
      _
    $region25: #{tpu_custom_call.1} parent=1 // pred_fallthru
      _
    // Predicated region
    $region26: #{tpu_custom_call.1} parent=1 // pred_check
      _
    $region27: #{tpu_custom_call.1} parent=1 // pred_check_branch
      %71 = sbr.rel (0) target = $region29
    $region28: #{tpu_custom_call.1} parent=1 // pred_region
      _
    $region29: #{tpu_custom_call.1} parent=1 // pred_fallthru
      _
    // Predicated region
    $region30: #{tpu_custom_call.1} parent=1 // pred_check
      _
    $region31: #{tpu_custom_call.1} parent=1 // pred_check_branch
      %73 = sbr.rel (0) target = $region33
    $region32: #{tpu_custom_call.1} parent=1 // pred_region
      %s75 = ssub.s32 12288, 12288
      %76 = vsyncadd [#allocation9], %s75
      %s77 = sshll.u32 [#allocation10], 4
      %s78 = int_to_ptr.vmem [resolvable:$true] %s77
      %83 = dma.hbm_to_vmem [thread:$0]  %s7, 12288, %s78, [#allocation9], 128, 128, 8
    $region33: #{tpu_custom_call.1} parent=1 // pred_fallthru
      _
    // Predicated region
    $region34: #{tpu_custom_call.1} parent=1 // pred_check
      _
    $region35: #{tpu_custom_call.1} parent=1 // pred_check_branch
      %85 = sbr.rel (0) target = $region37
    $region36: #{tpu_custom_call.1} parent=1 // pred_region
      _
    $region37: #{tpu_custom_call.1} parent=1 // pred_fallthru
      _
    // Predicated region
    $region38: #{tpu_custom_call.1} parent=1 // pred_check
      _
    $region39: #{tpu_custom_call.1} parent=1 // pred_check_branch
      %87 = sbr.rel (0) target = $region41
    $region40: #{tpu_custom_call.1} parent=1 // pred_region
      _
    $region41: #{tpu_custom_call.1} parent=1 // pred_fallthru
      _
    // Predicated region
    $region42: #{tpu_custom_call.1} parent=1 // pred_check
      _
    $region43: #{tpu_custom_call.1} parent=1 // pred_check_branch
      %89 = sbr.rel (0) target = $region45
    $region44: #{tpu_custom_call.1} parent=1 // pred_region
      _
    $region45: #{tpu_custom_call.1} parent=1 // pred_fallthru
      _
    // Predicated region
    $region46: #{tpu_custom_call.1} parent=1 // pred_check
      _
    $region47: #{tpu_custom_call.1} parent=1 // pred_check_branch
      %91 = sbr.rel (0) target = $region49
    $region48: #{tpu_custom_call.1} parent=1 // pred_region
      %92 = dma.done [#allocation3], 512
    $region49: #{tpu_custom_call.1} parent=1 // pred_fallthru
      _
    // Predicated region
    $region50: #{tpu_custom_call.1} parent=1 // pred_check
      _
    $region51: #{tpu_custom_call.1} parent=1 // pred_check_branch
      %94 = sbr.rel (0) target = $region53
    $region52: #{tpu_custom_call.1} parent=1 // pred_region
      %95 = dma.done [#allocation6], 2048
    $region53: #{tpu_custom_call.1} parent=1 // pred_fallthru
      _
    // Predicated region
    $region54: #{tpu_custom_call.1} parent=1 // pred_check
      _
    $region55: #{tpu_custom_call.1} parent=1 // pred_check_branch
      %97 = sbr.rel (0) target = $region57
    $region56: #{tpu_custom_call.1} parent=1 // pred_region
      %98 = dma.done [#allocation6], 16
    $region57: #{tpu_custom_call.1} parent=1 // pred_fallthru
      _
    // Predicated region
    $region58: #{tpu_custom_call.1} parent=1 // pred_check
      _
    $region59: #{tpu_custom_call.1} parent=1 // pred_check_branch
      %100 = sbr.rel (0) target = $region61
    $region60: #{tpu_custom_call.1} parent=1 // pred_region
      %101 = dma.done [#allocation9], 6144
    $region61: #{tpu_custom_call.1} parent=1 // pred_fallthru
      _
    // Predicated region
    $region62: #{tpu_custom_call.1} parent=1 // pred_check
      _
    $region63: #{tpu_custom_call.1} parent=1 // pred_check_branch
      %103 = sbr.rel (0) target = $region65
    $region64: #{tpu_custom_call.1} parent=1 // pred_region
      %104 = dma.done [#allocation9], 12288
    $region65: #{tpu_custom_call.1} parent=1 // pred_fallthru
      _
    %v106 = vld [vmem:[#allocation2] sm:$0xff]
    %v107 = vld [vmem:[#allocation2 + $0x8] sm:$0xff]
    %v108 = vld [vmem:[#allocation2 + $0x10] sm:$0xff]
    %v109 = vld [vmem:[#allocation2 + $0x18] sm:$0xff]
    %v110 = vadd.f32 %v106, %v107
    %v111 = vadd.f32 %v110, %v108
    %v112 = vadd.f32 %v111, %v109
    %v113 = vrot.slane %v112, 4
    %v114 = vadd.f32 %v112, %v113
    %v115 = vrot.slane %v114, 2
    %v116 = vadd.f32 %v114, %v115
    %v117 = vrot.slane %v116, 1
    %v118 = vadd.f32 %v116, %v117
    %v119 = vmul.f32 %v106, %v106
    %v120 = vmul.f32 %v107, %v107
    %v121 = vmul.f32 %v108, %v108
    %v122 = vmul.f32 %v109, %v109
    %v123 = vadd.f32 %v119, %v120
    %v124 = vadd.f32 %v123, %v121
    %v125 = vadd.f32 %v124, %v122
    %v126 = vrot.slane %v125, 4
    %v127 = vadd.f32 %v125, %v126
    %v128 = vrot.slane %v127, 2
    %v129 = vadd.f32 %v127, %v128
    %v130 = vrot.slane %v129, 1
    %v131 = vadd.f32 %v129, %v130
    %vm132 = vcmask 1040384
    %v133 = vsel %vm132, %v118, %v131
    %v134 = vld [vmem:[#allocation5] sm:$0xff]
    %v135 = vld [vmem:[#allocation5 + $0x8] sm:$0xff]
    %v136 = vld [vmem:[#allocation5 + $0x10] sm:$0xff]
    %v137 = vld [vmem:[#allocation5 + $0x18] sm:$0xff]
    %v138 = vld [vmem:[#allocation5 + $0x20] sm:$0xff]
    %v139 = vld [vmem:[#allocation5 + $0x28] sm:$0xff]
    %v140 = vld [vmem:[#allocation5 + $0x30] sm:$0xff]
    %v141 = vld [vmem:[#allocation5 + $0x38] sm:$0xff]
    %v142 = vld [vmem:[#allocation5 + $0x40] sm:$0xff]
    %v143 = vld [vmem:[#allocation5 + $0x48] sm:$0xff]
    %v144 = vld [vmem:[#allocation5 + $0x50] sm:$0xff]
    %v145 = vld [vmem:[#allocation5 + $0x58] sm:$0xff]
    %v146 = vld [vmem:[#allocation5 + $0x60] sm:$0xff]
    %v147 = vld [vmem:[#allocation5 + $0x68] sm:$0xff]
    %v148 = vld [vmem:[#allocation5 + $0x70] sm:$0xff]
    %v149 = vld [vmem:[#allocation5 + $0x78] sm:$0xff]
    %150 = vmatprep.subr.mxu0 0.0
    %151 = vmatpush1.msra.mxu0 %v134
    %152 = vmatprep.subr.mxu0 0.0
    %153 = vmatpush1.msra.mxu0 %v135
    %154 = vmatprep.subr.mxu0 0.0
    %155 = vmatpush1.msra.mxu0 %v136
    %156 = vmatprep.subr.mxu0 0.0
    %157 = vmatpush1.msra.mxu0 %v137
    %158 = vmatprep.subr.mxu0 0.0
    %159 = vmatpush1.msra.mxu0 %v138
    %160 = vmatprep.subr.mxu0 0.0
    %161 = vmatpush1.msra.mxu0 %v139
    %162 = vmatprep.subr.mxu0 0.0
    %163 = vmatpush1.msra.mxu0 %v140
    %164 = vmatprep.subr.mxu0 0.0
    %165 = vmatpush1.msra.mxu0 %v141
    %166 = vmatprep.subr.mxu0 0.0
    %167 = vmatpush1.msra.mxu0 %v142
    %168 = vmatprep.subr.mxu0 0.0
    %169 = vmatpush1.msra.mxu0 %v143
    %170 = vmatprep.subr.mxu0 0.0
    %171 = vmatpush1.msra.mxu0 %v144
    %172 = vmatprep.subr.mxu0 0.0
    %173 = vmatpush1.msra.mxu0 %v145
    %174 = vmatprep.subr.mxu0 0.0
    %175 = vmatpush1.msra.mxu0 %v146
    %176 = vmatprep.subr.mxu0 0.0
    %177 = vmatpush1.msra.mxu0 %v147
    %178 = vmatprep.subr.mxu0 0.0
    %179 = vmatpush1.msra.mxu0 %v148
    %180 = vmatprep.subr.mxu0 0.0
    %181 = vmatpush1.msra.mxu0 %v149
    %182 = vmatprep.subr.mxu0 0.0
    %183 = vmatpush1.msra.mxu0 0.0
    %184 = vmatprep.subr.mxu0 0.0
    %185 = vmatpush1.msra.mxu0 0.0
    %186 = vmatprep.subr.mxu0 0.0
    %187 = vmatpush1.msra.mxu0 0.0
    %188 = vmatprep.subr.mxu0 0.0
    %189 = vmatpush1.msra.mxu0 0.0
    %190 = vmatprep.subr.mxu0 0.0
    %191 = vmatpush1.msra.mxu0 0.0
    %192 = vmatprep.subr.mxu0 0.0
    %193 = vmatpush1.msra.mxu0 0.0
    %194 = vmatprep.subr.mxu0 0.0
    %195 = vmatpush1.msra.mxu0 0.0
    %196 = vmatprep.subr.mxu0 0.0
    %197 = vmatpush1.msra.mxu0 0.0
    %198 = vmatprep.subr.mxu0 0.0
    %199 = vmatpush1.msra.mxu0 0.0
    %200 = vmatprep.subr.mxu0 0.0
    %201 = vmatpush1.msra.mxu0 0.0
    %202 = vmatprep.subr.mxu0 0.0
    %203 = vmatpush1.msra.mxu0 0.0
    %204 = vmatprep.subr.mxu0 0.0
    %205 = vmatpush1.msra.mxu0 0.0
    %206 = vmatprep.subr.mxu0 0.0
    %207 = vmatpush1.msra.mxu0 0.0
    %208 = vmatprep.subr.mxu0 0.0
    %209 = vmatpush1.msra.mxu0 0.0
    %210 = vmatprep.subr.mxu0 0.0
    %211 = vmatpush1.msra.mxu0 0.0
    %212 = vmatprep.subr.mxu0 0.0
    %213 = vmatpush1.msra.mxu0 0.0
    %214 = vmatprep.mubr.f32.mxu0 0.0
    %215 = vmatmul.mubr.f32.gmra.mrb[0].mxu0 %v133
    %v216 = vpop.f32.mrb[0].mxu0
    %v217 = vadd.f32 0.0, %v216
    %v218 = vpop.f32.mrb[0].mxu0
    %219 = vdwg.mxu0
    %v220 = vmul.f32 %v217, 0.001953125
    %v221 = vmul.f32 %v220, %v220
    %v223 = vrot.slane %v221, 7
    %v225 = vsub.f32 %v220, %v223
    %v226 = vld [vmem:[%s2] sm:$0x1]
    %v227 = vadd.f32 %v225, 1e-05
    %v228 = vrsqrt.pop %v227
    %v231 = vunpack.c.l.s4 1966171168
    %v232 = vunpack.c.0.s8 %v231
    %v233 = vlaneseq
    %v234 = vshrl.u32 %v233, 7
    %v235 = vsub.s32 %v232, %v234
    %v236 = vrot.slane %v228, %v235
    %v237 = vcombine.high %v236, %v236
    %v239 = vunpack.c.l.s4 1966171168
    %v240 = vunpack.c.0.s8 %v239
    %v241 = vlaneseq
    %v242 = vshrl.u32 %v241, 7
    %v243 = vsub.s32 %v240, %v242
    %v244 = vrot.slane %v237, %v243
    %v246 = vmul.f32 %v226, %v244
    %v247 = vld [vmem:[#allocation7] sm:$0x1]
    %v248 = vmul.f32 %v220, %v246
    %v249 = vsub.f32 %v247, %v248
    %v251 = vlaneseq
    %v252 = vshrl.u32 %v251, 7
    %v253 = vsub.s32 0, %v252
    %v254 = vrot.slane %v246, %v253
    %v256 = vmul.f32 %v106, %v254
    %v257 = vmul.f32 %v107, %v254
    %v258 = vmul.f32 %v108, %v254
    %v259 = vmul.f32 %v109, %v254
    %v261 = vlaneseq
    %v262 = vshrl.u32 %v261, 7
    %v263 = vsub.s32 0, %v262
    %v264 = vrot.slane %v249, %v263
    %v266 = vadd.f32 %v256, %v264
    %v267 = vadd.f32 %v257, %v264
    %v268 = vadd.f32 %v258, %v264
    %v269 = vadd.f32 %v259, %v264
    %v270 = vlaneseq
    %v271 = vshrl.u32 %v270, 7
    %v272 = vadd.s32 %v271, 8
    %v273 = vadd.s32 %v271, 16
    %v274 = vadd.s32 %v271, 24
    %vm275 = vcmp.lt.s32.totalorder %v271, 0
    %v276 = vsub.s32 0, %v271
    %v277 = vsel %vm275, %v276, %v271
    %v278 = vshrl.u32 %v277, 4
    %v279 = vand.u32 %v277, 15
    %v280 = vsub.s32 0, %v279
    %v281 = vsel %vm275, %v280, %v279
    %vm282 = vcmp.lt.s32.totalorder %v272, 0
    %v283 = vsub.s32 0, %v272
    %v284 = vsel %vm282, %v283, %v272
    %v285 = vshrl.u32 %v284, 4
    %v286 = vand.u32 %v284, 15
    %v287 = vsub.s32 0, %v286
    %v288 = vsel %vm282, %v287, %v286
    %vm289 = vcmp.lt.s32.totalorder %v273, 0
    %v290 = vsub.s32 0, %v273
    %v291 = vsel %vm289, %v290, %v273
    %v292 = vshrl.u32 %v291, 4
    %v293 = vand.u32 %v291, 15
    %v294 = vsub.s32 0, %v293
    %v295 = vsel %vm289, %v294, %v293
    %vm296 = vcmp.lt.s32.totalorder %v274, 0
    %v297 = vsub.s32 0, %v274
    %v298 = vsel %vm296, %v297, %v274
    %v299 = vshrl.u32 %v298, 4
    %v300 = vand.u32 %v298, 15
    %v301 = vsub.s32 0, %v300
    %v302 = vsel %vm296, %v301, %v300
    %vm303 = vcmp.ne.s32.totalorder %v281, 0
    %vm304 = vcmp.ne.s32.totalorder %v288, 0
    %vm305 = vcmp.ne.s32.totalorder %v295, 0
    %vm306 = vcmp.ne.s32.totalorder %v302, 0
    %vm307 = vcmp.lt.s32.totalorder %v281, 0
    %vm308 = vcmp.lt.s32.totalorder %v288, 0
    %vm309 = vcmp.lt.s32.totalorder %v295, 0
    %vm310 = vcmp.lt.s32.totalorder %v302, 0
    %vm311 = vmand %vm307, %vm303
    %vm312 = vmand %vm308, %vm304
    %vm313 = vmand %vm309, %vm305
    %vm314 = vmand %vm310, %vm306
    %v315 = vadd.s32 %v281, 16
    %v316 = vadd.s32 %v288, 16
    %v317 = vadd.s32 %v295, 16
    %v318 = vadd.s32 %v302, 16
    %v319 = vsel %vm311, %v315, %v281
    %v320 = vsel %vm312, %v316, %v288
    %v321 = vsel %vm313, %v317, %v295
    %v322 = vsel %vm314, %v318, %v302
    %vm323 = vcmp.gt.s32.totalorder %v319, 0
    %vm324 = vcmp.gt.s32.totalorder %v320, 0
    %vm325 = vcmp.gt.s32.totalorder %v321, 0
    %vm326 = vcmp.gt.s32.totalorder %v322, 0
    %vm327 = vcmp.lt.s32.totalorder %v319, 15
    %vm328 = vcmp.lt.s32.totalorder %v320, 15
    %vm329 = vcmp.lt.s32.totalorder %v321, 15
    %vm330 = vcmp.lt.s32.totalorder %v322, 15
    %v331 = vrot.slane %v266, 7
    %v332 = vrot.slane %v267, 7
    %v333 = vrot.slane %v268, 7
    %v334 = vrot.slane %v269, 7
    %vm335 = vcmp.lt.s32.totalorder %v271, 1
    %v336 = vsel %vm335, %v333, %v334
    %v337 = vsel %vm335, %v332, %v333
    %v338 = vsel %vm335, %v331, %v332
    %v339 = vsel %vm335, %v334, %v331
    %v340 = vsel %vm323, 1, 0
    %v341 = vsel %vm324, 1, 0
    %v342 = vsel %vm325, 1, 0
    %v343 = vsel %vm326, 1, 0
    %vm344 = vcmp.eq.s32.totalorder %v340, 1
    %vm345 = vcmp.eq.s32.totalorder %v341, 1
    %vm346 = vcmp.eq.s32.totalorder %v342, 1
    %vm347 = vcmp.eq.s32.totalorder %v343, 1
    %v348 = vsel %vm344, %v339, 0.0
    %v349 = vsel %vm345, %v338, 0.0
    %v350 = vsel %vm346, %v337, 0.0
    %v351 = vsel %vm347, %v336, 0.0
    %v352 = vrot.slane %v266, 1
    %v353 = vrot.slane %v267, 1
    %v354 = vrot.slane %v268, 1
    %v355 = vrot.slane %v269, 1
    %vm356 = vcmp.lt.s32.totalorder %v271, 7
    %v357 = vsel %vm356, %v354, %v355
    %v358 = vsel %vm356, %v353, %v354
    %v359 = vsel %vm356, %v352, %v353
    %v360 = vsel %vm356, %v355, %v352
    %v361 = vsel %vm327, 1, 0
    %v362 = vsel %vm328, 1, 0
    %v363 = vsel %vm329, 1, 0
    %v364 = vsel %vm330, 1, 0
    %vm365 = vcmp.eq.s32.totalorder %v361, 1
    %vm366 = vcmp.eq.s32.totalorder %v362, 1
    %vm367 = vcmp.eq.s32.totalorder %v363, 1
    %vm368 = vcmp.eq.s32.totalorder %v364, 1
    %v369 = vsel %vm365, %v359, 0.0
    %v370 = vsel %vm366, %v358, 0.0
    %v371 = vsel %vm367, %v357, 0.0
    %v372 = vsel %vm368, %v360, 0.0
    %v373 = vpack.c.bf16 %v349, %v348
    %v374 = vpack.c.bf16 %v351, %v350
    %v375 = vpack.c.bf16 %v267, %v266
    %v376 = vpack.c.bf16 %v269, %v268
    %v377 = vpack.c.bf16 %v370, %v369
    %v378 = vpack.c.bf16 %v372, %v371
    %v379 = vld [vmem:[#allocation8] sm:$0xff]
    %v380 = vld [vmem:[#allocation8 + $0x8] sm:$0xff]
    %v381 = vld [vmem:[#allocation8 + $0x10] sm:$0xff]
    %v382 = vld [vmem:[#allocation8 + $0x18] sm:$0xff]
    %v383 = vld [vmem:[#allocation8 + $0x20] sm:$0xff]
    %v384 = vld [vmem:[#allocation8 + $0x28] sm:$0xff]
    %v385 = vld [vmem:[#allocation8 + $0x30] sm:$0xff]
    %v386 = vld [vmem:[#allocation8 + $0x38] sm:$0xff]
    %v387 = vld [vmem:[#allocation8 + $0x40] sm:$0xff]
    %v388 = vld [vmem:[#allocation8 + $0x48] sm:$0xff]
    %v389 = vld [vmem:[#allocation8 + $0x50] sm:$0xff]
    %v390 = vld [vmem:[#allocation8 + $0x58] sm:$0xff]
    %v391 = vld [vmem:[#allocation8 + $0x60] sm:$0xff]
    %v392 = vld [vmem:[#allocation8 + $0x68] sm:$0xff]
    %v393 = vld [vmem:[#allocation8 + $0x70] sm:$0xff]
    %v394 = vld [vmem:[#allocation8 + $0x78] sm:$0xff]
    %v395 = vld [vmem:[#allocation8 + $0x80] sm:$0xff]
    %v396 = vld [vmem:[#allocation8 + $0x88] sm:$0xff]
    %v397 = vld [vmem:[#allocation8 + $0x90] sm:$0xff]
    %v398 = vld [vmem:[#allocation8 + $0x98] sm:$0xff]
    %v399 = vld [vmem:[#allocation8 + $0xa0] sm:$0xff]
    %v400 = vld [vmem:[#allocation8 + $0xa8] sm:$0xff]
    %v401 = vld [vmem:[#allocation8 + $0xb0] sm:$0xff]
    %v402 = vld [vmem:[#allocation8 + $0xb8] sm:$0xff]
    %v403 = vld [vmem:[#allocation8 + $0xc0] sm:$0xff]
    %v404 = vld [vmem:[#allocation8 + $0xc8] sm:$0xff]
    %v405 = vld [vmem:[#allocation8 + $0xd0] sm:$0xff]
    %v406 = vld [vmem:[#allocation8 + $0xd8] sm:$0xff]
    %v407 = vld [vmem:[#allocation8 + $0xe0] sm:$0xff]
    %v408 = vld [vmem:[#allocation8 + $0xe8] sm:$0xff]
    %v409 = vld [vmem:[#allocation8 + $0xf0] sm:$0xff]
    %v410 = vld [vmem:[#allocation8 + $0xf8] sm:$0xff]
    %v411 = vld [vmem:[#allocation8 + $0x100] sm:$0xff]
    %v412 = vld [vmem:[#allocation8 + $0x108] sm:$0xff]
    %v413 = vld [vmem:[#allocation8 + $0x110] sm:$0xff]
    %v414 = vld [vmem:[#allocation8 + $0x118] sm:$0xff]
    %v415 = vld [vmem:[#allocation8 + $0x120] sm:$0xff]
    %v416 = vld [vmem:[#allocation8 + $0x128] sm:$0xff]
    %v417 = vld [vmem:[#allocation8 + $0x130] sm:$0xff]
    %v418 = vld [vmem:[#allocation8 + $0x138] sm:$0xff]
    %v419 = vld [vmem:[#allocation8 + $0x140] sm:$0xff]
    %v420 = vld [vmem:[#allocation8 + $0x148] sm:$0xff]
    %v421 = vld [vmem:[#allocation8 + $0x150] sm:$0xff]
    %v422 = vld [vmem:[#allocation8 + $0x158] sm:$0xff]
    %v423 = vld [vmem:[#allocation8 + $0x160] sm:$0xff]
    %v424 = vld [vmem:[#allocation8 + $0x168] sm:$0xff]
    %v425 = vld [vmem:[#allocation8 + $0x170] sm:$0xff]
    %v426 = vld [vmem:[#allocation8 + $0x178] sm:$0xff]
    %v427 = vld [vmem:[%s5] sm:$0x3]
    %v429 = vlaneseq
    %v430 = vshrl.u32 %v429, 7
    %v431 = vsub.s32 0, %v430
    %v432 = vrot.slane %v427, %v431
    %v433 = vlaneseq
    %v434 = vshrl.u32 %v433, 7
    %v435 = vsub.s32 1, %v434
    %v436 = vrot.slane %v427, %v435
    %v487 = vunpack.c.l.b16 %v379
    %v488 = vunpack.c.h.b16 %v379
    %v489 = vunpack.c.l.b16 %v380
    %v490 = vunpack.c.h.b16 %v380
    %v491 = vunpack.c.l.b16 %v381
    %v492 = vunpack.c.h.b16 %v381
    %v493 = vunpack.c.l.b16 %v382
    %v494 = vunpack.c.h.b16 %v382
    %v495 = vunpack.c.l.b16 %v383
    %v496 = vunpack.c.h.b16 %v383
    %v497 = vunpack.c.l.b16 %v384
    %v498 = vunpack.c.h.b16 %v384
    %v499 = vunpack.c.l.b16 %v385
    %v500 = vunpack.c.h.b16 %v385
    %v501 = vunpack.c.l.b16 %v386
    %v502 = vunpack.c.h.b16 %v386
    %v503 = vunpack.c.l.b16 %v387
    %v504 = vunpack.c.h.b16 %v387
    %v505 = vunpack.c.l.b16 %v388
    %v506 = vunpack.c.h.b16 %v388
    %v507 = vunpack.c.l.b16 %v389
    %v508 = vunpack.c.h.b16 %v389
    %v509 = vunpack.c.l.b16 %v390
    %v510 = vunpack.c.h.b16 %v390
    %v511 = vunpack.c.l.b16 %v391
    %v512 = vunpack.c.h.b16 %v391
    %v513 = vunpack.c.l.b16 %v392
    %v514 = vunpack.c.h.b16 %v392
    %v515 = vunpack.c.l.b16 %v393
    %v516 = vunpack.c.h.b16 %v393
    %v517 = vunpack.c.l.b16 %v394
    %v518 = vunpack.c.h.b16 %v394
    %v519 = vunpack.c.l.b16 %v395
    %v520 = vunpack.c.h.b16 %v395
    %v521 = vunpack.c.l.b16 %v396
    %v522 = vunpack.c.h.b16 %v396
    %v523 = vunpack.c.l.b16 %v397
    %v524 = vunpack.c.h.b16 %v397
    %v525 = vunpack.c.l.b16 %v398
    %v526 = vunpack.c.h.b16 %v398
    %v527 = vunpack.c.l.b16 %v399
    %v528 = vunpack.c.h.b16 %v399
    %v529 = vunpack.c.l.b16 %v400
    %v530 = vunpack.c.h.b16 %v400
    %v531 = vunpack.c.l.b16 %v401
    %v532 = vunpack.c.h.b16 %v401
    %v533 = vunpack.c.l.b16 %v402
    %v534 = vunpack.c.h.b16 %v402
    %v535 = vunpack.c.l.b16 %v403
    %v536 = vunpack.c.h.b16 %v403
    %v537 = vunpack.c.l.b16 %v404
    %v538 = vunpack.c.h.b16 %v404
    %v539 = vunpack.c.l.b16 %v405
    %v540 = vunpack.c.h.b16 %v405
    %v541 = vunpack.c.l.b16 %v406
    %v542 = vunpack.c.h.b16 %v406
    %v543 = vunpack.c.l.b16 %v407
    %v544 = vunpack.c.h.b16 %v407
    %v545 = vunpack.c.l.b16 %v408
    %v546 = vunpack.c.h.b16 %v408
    %v547 = vunpack.c.l.b16 %v409
    %v548 = vunpack.c.h.b16 %v409
    %v549 = vunpack.c.l.b16 %v410
    %v550 = vunpack.c.h.b16 %v410
    %v551 = vunpack.c.l.b16 %v411
    %v552 = vunpack.c.h.b16 %v411
    %v553 = vunpack.c.l.b16 %v412
    %v554 = vunpack.c.h.b16 %v412
    %v555 = vunpack.c.l.b16 %v413
    %v556 = vunpack.c.h.b16 %v413
    %v557 = vunpack.c.l.b16 %v414
    %v558 = vunpack.c.h.b16 %v414
    %v559 = vunpack.c.l.b16 %v415
    %v560 = vunpack.c.h.b16 %v415
    %v561 = vunpack.c.l.b16 %v416
    %v562 = vunpack.c.h.b16 %v416
    %v563 = vunpack.c.l.b16 %v417
    %v564 = vunpack.c.h.b16 %v417
    %v565 = vunpack.c.l.b16 %v418
    %v566 = vunpack.c.h.b16 %v418
    %v567 = vunpack.c.l.b16 %v419
    %v568 = vunpack.c.h.b16 %v419
    %v569 = vunpack.c.l.b16 %v420
    %v570 = vunpack.c.h.b16 %v420
    %v571 = vunpack.c.l.b16 %v421
    %v572 = vunpack.c.h.b16 %v421
    %v573 = vunpack.c.l.b16 %v422
    %v574 = vunpack.c.h.b16 %v422
    %v575 = vunpack.c.l.b16 %v423
    %v576 = vunpack.c.h.b16 %v423
    %v577 = vunpack.c.l.b16 %v424
    %v578 = vunpack.c.h.b16 %v424
    %v579 = vunpack.c.l.b16 %v425
    %v580 = vunpack.c.h.b16 %v425
    %v581 = vunpack.c.l.b16 %v426
    %v582 = vunpack.c.h.b16 %v426
    %v583 = vpack.c.b16 %v489, %v487
    %v584 = vpack.c.b16 %v490, %v488
    %v585 = vpack.c.b16 %v493, %v491
    %v586 = vpack.c.b16 %v494, %v492
    %v587 = vpack.c.b16 %v497, %v495
    %v588 = vpack.c.b16 %v498, %v496
    %v589 = vpack.c.b16 %v501, %v499
    %v590 = vpack.c.b16 %v502, %v500
    %v591 = vpack.c.b16 %v505, %v503
    %v592 = vpack.c.b16 %v506, %v504
    %v593 = vpack.c.b16 %v509, %v507
    %v594 = vpack.c.b16 %v510, %v508
    %v595 = vpack.c.b16 %v513, %v511
    %v596 = vpack.c.b16 %v514, %v512
    %v597 = vpack.c.b16 %v517, %v515
    %v598 = vpack.c.b16 %v518, %v516
    %v599 = vpack.c.b16 %v521, %v519
    %v600 = vpack.c.b16 %v522, %v520
    %v601 = vpack.c.b16 %v525, %v523
    %v602 = vpack.c.b16 %v526, %v524
    %v603 = vpack.c.b16 %v529, %v527
    %v604 = vpack.c.b16 %v530, %v528
    %v605 = vpack.c.b16 %v533, %v531
    %v606 = vpack.c.b16 %v534, %v532
    %v607 = vpack.c.b16 %v537, %v535
    %v608 = vpack.c.b16 %v538, %v536
    %v609 = vpack.c.b16 %v541, %v539
    %v610 = vpack.c.b16 %v542, %v540
    %v611 = vpack.c.b16 %v545, %v543
    %v612 = vpack.c.b16 %v546, %v544
    %v613 = vpack.c.b16 %v549, %v547
    %v614 = vpack.c.b16 %v550, %v548
    %v615 = vpack.c.b16 %v553, %v551
    %v616 = vpack.c.b16 %v554, %v552
    %v617 = vpack.c.b16 %v557, %v555
    %v618 = vpack.c.b16 %v558, %v556
    %v619 = vpack.c.b16 %v561, %v559
    %v620 = vpack.c.b16 %v562, %v560
    %v621 = vpack.c.b16 %v565, %v563
    %v622 = vpack.c.b16 %v566, %v564
    %v623 = vpack.c.b16 %v569, %v567
    %v624 = vpack.c.b16 %v570, %v568
    %v625 = vpack.c.b16 %v573, %v571
    %v626 = vpack.c.b16 %v574, %v572
    %v627 = vpack.c.b16 %v577, %v575
    %v628 = vpack.c.b16 %v578, %v576
    %v629 = vpack.c.b16 %v581, %v579
    %v630 = vpack.c.b16 %v582, %v580
    %679 = vmatprep.subr.bf16.mxu0 %v584
    %680 = vmatpush1.bf16.msra.mxu0 %v583
    %681 = vmatprep.subr.bf16.mxu0 %v586
    %682 = vmatpush1.bf16.msra.mxu0 %v585
    %683 = vmatprep.subr.bf16.mxu0 %v588
    %684 = vmatpush1.bf16.msra.mxu0 %v587
    %685 = vmatprep.subr.bf16.mxu0 %v590
    %686 = vmatpush1.bf16.msra.mxu0 %v589
    %687 = vmatprep.subr.bf16.mxu0 %v592
    %688 = vmatpush1.bf16.msra.mxu0 %v591
    %689 = vmatprep.subr.bf16.mxu0 %v594
    %690 = vmatpush1.bf16.msra.mxu0 %v593
    %691 = vmatprep.subr.bf16.mxu0 %v596
    %692 = vmatpush1.bf16.msra.mxu0 %v595
    %693 = vmatprep.subr.bf16.mxu0 %v598
    %694 = vmatpush1.bf16.msra.mxu0 %v597
    %695 = vmatprep.subr.bf16.mxu0 %v600
    %696 = vmatpush1.bf16.msra.mxu0 %v599
    %697 = vmatprep.subr.bf16.mxu0 %v602
    %698 = vmatpush1.bf16.msra.mxu0 %v601
    %699 = vmatprep.subr.bf16.mxu0 %v604
    %700 = vmatpush1.bf16.msra.mxu0 %v603
    %701 = vmatprep.subr.bf16.mxu0 %v606
    %702 = vmatpush1.bf16.msra.mxu0 %v605
    %703 = vmatprep.subr.bf16.mxu0 %v608
    %704 = vmatpush1.bf16.msra.mxu0 %v607
    %705 = vmatprep.subr.bf16.mxu0 %v610
    %706 = vmatpush1.bf16.msra.mxu0 %v609
    %707 = vmatprep.subr.bf16.mxu0 %v612
    %708 = vmatpush1.bf16.msra.mxu0 %v611
    %709 = vmatprep.subr.bf16.mxu0 %v614
    %710 = vmatpush1.bf16.msra.mxu0 %v613
    %711 = vmatprep.mubr.bf16.mxu0 %v375
    %712 = vmatmul.mubr.bf16.gmra.mrb[0].mxu0 %v373
    %v713 = vpop.f32.mrb[0].mxu0
    %v714 = vadd.f32 %v432, %v713
    %v715 = vpop.f32.mrb[0].mxu0
    %v716 = vadd.f32 %v436, %v715
    %v717 = vpop.f32.mrb[0].mxu0
    %v718 = vadd.f32 %v432, %v717
    %v719 = vpop.f32.mrb[0].mxu0
    %v720 = vadd.f32 %v436, %v719
    %721 = vmatprep.mubr.bf16.mxu0 %v376
    %722 = vmatmul.mubr.bf16.gmra.mrb[0].mxu0 %v374
    %v723 = vpop.f32.mrb[0].mxu0
    %v724 = vadd.f32 %v432, %v723
    %v725 = vpop.f32.mrb[0].mxu0
    %v726 = vadd.f32 %v436, %v725
    %v727 = vpop.f32.mrb[0].mxu0
    %v728 = vadd.f32 %v432, %v727
    %v729 = vpop.f32.mrb[0].mxu0
    %v730 = vadd.f32 %v436, %v729
    %731 = vdwg.mxu0
    %732 = vmatprep.subr.bf16.mxu0 %v616
    %733 = vmatpush1.bf16.msra.mxu0 %v615
    %734 = vmatprep.subr.bf16.mxu0 %v618
    %735 = vmatpush1.bf16.msra.mxu0 %v617
    %736 = vmatprep.subr.bf16.mxu0 %v620
    %737 = vmatpush1.bf16.msra.mxu0 %v619
    %738 = vmatprep.subr.bf16.mxu0 %v622
    %739 = vmatpush1.bf16.msra.mxu0 %v621
    %740 = vmatprep.subr.bf16.mxu0 %v624
    %741 = vmatpush1.bf16.msra.mxu0 %v623
    %742 = vmatprep.subr.bf16.mxu0 %v626
    %743 = vmatpush1.bf16.msra.mxu0 %v625
    %744 = vmatprep.subr.bf16.mxu0 %v628
    %745 = vmatpush1.bf16.msra.mxu0 %v627
    %746 = vmatprep.subr.bf16.mxu0 %v630
    %747 = vmatpush1.bf16.msra.mxu0 %v629
    %748 = vmatprep.subr.bf16.mxu0 0
    %749 = vmatpush1.bf16.msra.mxu0 0
    %750 = vmatprep.subr.bf16.mxu0 0
    %751 = vmatpush1.bf16.msra.mxu0 0
    %752 = vmatprep.subr.bf16.mxu0 0
    %753 = vmatpush1.bf16.msra.mxu0 0
    %754 = vmatprep.subr.bf16.mxu0 0
    %755 = vmatpush1.bf16.msra.mxu0 0
    %756 = vmatprep.subr.bf16.mxu0 0
    %757 = vmatpush1.bf16.msra.mxu0 0
    %758 = vmatprep.subr.bf16.mxu0 0
    %759 = vmatpush1.bf16.msra.mxu0 0
    %760 = vmatprep.subr.bf16.mxu0 0
    %761 = vmatpush1.bf16.msra.mxu0 0
    %762 = vmatprep.subr.bf16.mxu0 0
    %763 = vmatpush1.bf16.msra.mxu0 0
    %764 = vmatprep.mubr.bf16.mxu0 0
    %765 = vmatmul.mubr.bf16.gmra.mrb[0].mxu0 %v377
    %v766 = vpop.f32.mrb[0].mxu0
    %v767 = vadd.f32 %v714, %v766
    %v768 = vpop.f32.mrb[0].mxu0
    %v769 = vadd.f32 %v716, %v768
    %v770 = vpop.f32.mrb[0].mxu0
    %v771 = vadd.f32 %v718, %v770
    %v772 = vpop.f32.mrb[0].mxu0
    %v773 = vadd.f32 %v720, %v772
    %774 = vmatprep.mubr.bf16.mxu0 0
    %775 = vmatmul.mubr.bf16.gmra.mrb[0].mxu0 %v378
    %v776 = vpop.f32.mrb[0].mxu0
    %v777 = vadd.f32 %v724, %v776
    %v778 = vpop.f32.mrb[0].mxu0
    %v779 = vadd.f32 %v726, %v778
    %v780 = vpop.f32.mrb[0].mxu0
    %v781 = vadd.f32 %v728, %v780
    %v782 = vpop.f32.mrb[0].mxu0
    %v783 = vadd.f32 %v730, %v782
    %784 = vdwg.mxu0
    %vm785 = vcmp.ge.f32.partialorder %v767, 0.0
    %vm786 = vcmp.ge.f32.partialorder %v769, 0.0
    %vm787 = vcmp.ge.f32.partialorder %v771, 0.0
    %vm788 = vcmp.ge.f32.partialorder %v773, 0.0
    %vm789 = vcmp.ge.f32.partialorder %v777, 0.0
    %vm790 = vcmp.ge.f32.partialorder %v779, 0.0
    %vm791 = vcmp.ge.f32.partialorder %v781, 0.0
    %vm792 = vcmp.ge.f32.partialorder %v783, 0.0
    %v793 = vld [vmem:[%s6] sm:$0x3]
    %v795 = vlaneseq
    %v796 = vshrl.u32 %v795, 7
    %v797 = vsub.s32 0, %v796
    %v798 = vrot.slane %v793, %v797
    %v799 = vlaneseq
    %v800 = vshrl.u32 %v799, 7
    %v801 = vsub.s32 1, %v800
    %v802 = vrot.slane %v793, %v801
    %v805 = vmul.f32 %v798, %v767
    %v806 = vmul.f32 %v802, %v769
    %v807 = vmul.f32 %v798, %v771
    %v808 = vmul.f32 %v802, %v773
    %v809 = vmul.f32 %v798, %v777
    %v810 = vmul.f32 %v802, %v779
    %v811 = vmul.f32 %v798, %v781
    %v812 = vmul.f32 %v802, %v783
    %v813 = vsel %vm785, %v767, %v805
    %v814 = vsel %vm786, %v769, %v806
    %v815 = vsel %vm787, %v771, %v807
    %v816 = vsel %vm788, %v773, %v808
    %v817 = vsel %vm789, %v777, %v809
    %v818 = vsel %vm790, %v779, %v810
    %v819 = vsel %vm791, %v781, %v811
    %v820 = vsel %vm792, %v783, %v812
    %v821 = vrot.slane %v813, 7
    %v822 = vrot.slane %v814, 7
    %v823 = vrot.slane %v815, 7
    %v824 = vrot.slane %v816, 7
    %v825 = vrot.slane %v817, 7
    %v826 = vrot.slane %v818, 7
    %v827 = vrot.slane %v819, 7
    %v828 = vrot.slane %v820, 7
    %v829 = vsel %vm335, %v825, %v827
    %v830 = vsel %vm335, %v826, %v828
    %v831 = vsel %vm335, %v823, %v825
    %v832 = vsel %vm335, %v824, %v826
    %v833 = vsel %vm335, %v821, %v823
    %v834 = vsel %vm335, %v822, %v824
    %v835 = vsel %vm335, %v827, %v821
    %v836 = vsel %vm335, %v828, %v822
    %v837 = vsel %vm344, %v835, 0.0
    %v838 = vsel %vm344, %v836, 0.0
    %v839 = vsel %vm345, %v833, 0.0
    %v840 = vsel %vm345, %v834, 0.0
    %v841 = vsel %vm346, %v831, 0.0
    %v842 = vsel %vm346, %v832, 0.0
    %v843 = vsel %vm347, %v829, 0.0
    %v844 = vsel %vm347, %v830, 0.0
    %v845 = vrot.slane %v813, 1
    %v846 = vrot.slane %v814, 1
    %v847 = vrot.slane %v815, 1
    %v848 = vrot.slane %v816, 1
    %v849 = vrot.slane %v817, 1
    %v850 = vrot.slane %v818, 1
    %v851 = vrot.slane %v819, 1
    %v852 = vrot.slane %v820, 1
    %v853 = vsel %vm356, %v849, %v851
    %v854 = vsel %vm356, %v850, %v852
    %v855 = vsel %vm356, %v847, %v849
    %v856 = vsel %vm356, %v848, %v850
    %v857 = vsel %vm356, %v845, %v847
    %v858 = vsel %vm356, %v846, %v848
    %v859 = vsel %vm356, %v851, %v845
    %v860 = vsel %vm356, %v852, %v846
    %v861 = vsel %vm365, %v857, 0.0
    %v862 = vsel %vm365, %v858, 0.0
    %v863 = vsel %vm366, %v855, 0.0
    %v864 = vsel %vm366, %v856, 0.0
    %v865 = vsel %vm367, %v853, 0.0
    %v866 = vsel %vm367, %v854, 0.0
    %v867 = vsel %vm368, %v859, 0.0
    %v868 = vsel %vm368, %v860, 0.0
    %v869 = vpack.c.bf16 %v839, %v837
    %v870 = vpack.c.bf16 %v840, %v838
    %v871 = vpack.c.bf16 %v843, %v841
    %v872 = vpack.c.bf16 %v844, %v842
    %v873 = vpack.c.bf16 %v815, %v813
    %v874 = vpack.c.bf16 %v816, %v814
    %v875 = vpack.c.bf16 %v819, %v817
    %v876 = vpack.c.bf16 %v820, %v818
    %v877 = vpack.c.bf16 %v863, %v861
    %v878 = vpack.c.bf16 %v864, %v862
    %v879 = vpack.c.bf16 %v867, %v865
    %v880 = vpack.c.bf16 %v868, %v866
    %v881 = vld [vmem:[#allocation10] sm:$0xff]
    %v882 = vld [vmem:[#allocation10 + $0x8] sm:$0xff]
    %v883 = vld [vmem:[#allocation10 + $0x10] sm:$0xff]
    %v884 = vld [vmem:[#allocation10 + $0x18] sm:$0xff]
    %v885 = vld [vmem:[#allocation10 + $0x20] sm:$0xff]
    %v886 = vld [vmem:[#allocation10 + $0x28] sm:$0xff]
    %v887 = vld [vmem:[#allocation10 + $0x30] sm:$0xff]
    %v888 = vld [vmem:[#allocation10 + $0x38] sm:$0xff]
    %v889 = vld [vmem:[#allocation10 + $0x40] sm:$0xff]
    %v890 = vld [vmem:[#allocation10 + $0x48] sm:$0xff]
    %v891 = vld [vmem:[#allocation10 + $0x50] sm:$0xff]
    %v892 = vld [vmem:[#allocation10 + $0x58] sm:$0xff]
    %v893 = vld [vmem:[#allocation10 + $0x60] sm:$0xff]
    %v894 = vld [vmem:[#allocation10 + $0x68] sm:$0xff]
    %v895 = vld [vmem:[#allocation10 + $0x70] sm:$0xff]
    %v896 = vld [vmem:[#allocation10 + $0x78] sm:$0xff]
    %v897 = vld [vmem:[#allocation10 + $0x80] sm:$0xff]
    %v898 = vld [vmem:[#allocation10 + $0x88] sm:$0xff]
    %v899 = vld [vmem:[#allocation10 + $0x90] sm:$0xff]
    %v900 = vld [vmem:[#allocation10 + $0x98] sm:$0xff]
    %v901 = vld [vmem:[#allocation10 + $0xa0] sm:$0xff]
    %v902 = vld [vmem:[#allocation10 + $0xa8] sm:$0xff]
    %v903 = vld [vmem:[#allocation10 + $0xb0] sm:$0xff]
    %v904 = vld [vmem:[#allocation10 + $0xb8] sm:$0xff]
    %v905 = vld [vmem:[#allocation10 + $0xc0] sm:$0xff]
    %v906 = vld [vmem:[#allocation10 + $0xc8] sm:$0xff]
    %v907 = vld [vmem:[#allocation10 + $0xd0] sm:$0xff]
    %v908 = vld [vmem:[#allocation10 + $0xd8] sm:$0xff]
    %v909 = vld [vmem:[#allocation10 + $0xe0] sm:$0xff]
    %v910 = vld [vmem:[#allocation10 + $0xe8] sm:$0xff]
    %v911 = vld [vmem:[#allocation10 + $0xf0] sm:$0xff]
    %v912 = vld [vmem:[#allocation10 + $0xf8] sm:$0xff]
    %v913 = vld [vmem:[#allocation10 + $0x100] sm:$0xff]
    %v914 = vld [vmem:[#allocation10 + $0x108] sm:$0xff]
    %v915 = vld [vmem:[#allocation10 + $0x110] sm:$0xff]
    %v916 = vld [vmem:[#allocation10 + $0x118] sm:$0xff]
    %v917 = vld [vmem:[#allocation10 + $0x120] sm:$0xff]
    %v918 = vld [vmem:[#allocation10 + $0x128] sm:$0xff]
    %v919 = vld [vmem:[#allocation10 + $0x130] sm:$0xff]
    %v920 = vld [vmem:[#allocation10 + $0x138] sm:$0xff]
    %v921 = vld [vmem:[#allocation10 + $0x140] sm:$0xff]
    %v922 = vld [vmem:[#allocation10 + $0x148] sm:$0xff]
    %v923 = vld [vmem:[#allocation10 + $0x150] sm:$0xff]
    %v924 = vld [vmem:[#allocation10 + $0x158] sm:$0xff]
    %v925 = vld [vmem:[#allocation10 + $0x160] sm:$0xff]
    %v926 = vld [vmem:[#allocation10 + $0x168] sm:$0xff]
    %v927 = vld [vmem:[#allocation10 + $0x170] sm:$0xff]
    %v928 = vld [vmem:[#allocation10 + $0x178] sm:$0xff]
    %v929 = vld [vmem:[#allocation10 + $0x180] sm:$0xff]
    %v930 = vld [vmem:[#allocation10 + $0x188] sm:$0xff]
    %v931 = vld [vmem:[#allocation10 + $0x190] sm:$0xff]
    %v932 = vld [vmem:[#allocation10 + $0x198] sm:$0xff]
    %v933 = vld [vmem:[#allocation10 + $0x1a0] sm:$0xff]
    %v934 = vld [vmem:[#allocation10 + $0x1a8] sm:$0xff]
    %v935 = vld [vmem:[#allocation10 + $0x1b0] sm:$0xff]
    %v936 = vld [vmem:[#allocation10 + $0x1b8] sm:$0xff]
    %v937 = vld [vmem:[#allocation10 + $0x1c0] sm:$0xff]
    %v938 = vld [vmem:[#allocation10 + $0x1c8] sm:$0xff]
    %v939 = vld [vmem:[#allocation10 + $0x1d0] sm:$0xff]
    %v940 = vld [vmem:[#allocation10 + $0x1d8] sm:$0xff]
    %v941 = vld [vmem:[#allocation10 + $0x1e0] sm:$0xff]
    %v942 = vld [vmem:[#allocation10 + $0x1e8] sm:$0xff]
    %v943 = vld [vmem:[#allocation10 + $0x1f0] sm:$0xff]
    %v944 = vld [vmem:[#allocation10 + $0x1f8] sm:$0xff]
    %v945 = vld [vmem:[#allocation10 + $0x200] sm:$0xff]
    %v946 = vld [vmem:[#allocation10 + $0x208] sm:$0xff]
    %v947 = vld [vmem:[#allocation10 + $0x210] sm:$0xff]
    %v948 = vld [vmem:[#allocation10 + $0x218] sm:$0xff]
    %v949 = vld [vmem:[#allocation10 + $0x220] sm:$0xff]
    %v950 = vld [vmem:[#allocation10 + $0x228] sm:$0xff]
    %v951 = vld [vmem:[#allocation10 + $0x230] sm:$0xff]
    %v952 = vld [vmem:[#allocation10 + $0x238] sm:$0xff]
    %v953 = vld [vmem:[#allocation10 + $0x240] sm:$0xff]
    %v954 = vld [vmem:[#allocation10 + $0x248] sm:$0xff]
    %v955 = vld [vmem:[#allocation10 + $0x250] sm:$0xff]
    %v956 = vld [vmem:[#allocation10 + $0x258] sm:$0xff]
    %v957 = vld [vmem:[#allocation10 + $0x260] sm:$0xff]
    %v958 = vld [vmem:[#allocation10 + $0x268] sm:$0xff]
    %v959 = vld [vmem:[#allocation10 + $0x270] sm:$0xff]
    %v960 = vld [vmem:[#allocation10 + $0x278] sm:$0xff]
    %v961 = vld [vmem:[#allocation10 + $0x280] sm:$0xff]
    %v962 = vld [vmem:[#allocation10 + $0x288] sm:$0xff]
    %v963 = vld [vmem:[#allocation10 + $0x290] sm:$0xff]
    %v964 = vld [vmem:[#allocation10 + $0x298] sm:$0xff]
    %v965 = vld [vmem:[#allocation10 + $0x2a0] sm:$0xff]
    %v966 = vld [vmem:[#allocation10 + $0x2a8] sm:$0xff]
    %v967 = vld [vmem:[#allocation10 + $0x2b0] sm:$0xff]
    %v968 = vld [vmem:[#allocation10 + $0x2b8] sm:$0xff]
    %v969 = vld [vmem:[#allocation10 + $0x2c0] sm:$0xff]
    %v970 = vld [vmem:[#allocation10 + $0x2c8] sm:$0xff]
    %v971 = vld [vmem:[#allocation10 + $0x2d0] sm:$0xff]
    %v972 = vld [vmem:[#allocation10 + $0x2d8] sm:$0xff]
    %v973 = vld [vmem:[#allocation10 + $0x2e0] sm:$0xff]
    %v974 = vld [vmem:[#allocation10 + $0x2e8] sm:$0xff]
    %v975 = vld [vmem:[#allocation10 + $0x2f0] sm:$0xff]
    %v976 = vld [vmem:[#allocation10 + $0x2f8] sm:$0xff]
    %v977 = vld [vmem:[%s8] sm:$0x3]
    %v979 = vlaneseq
    %v980 = vshrl.u32 %v979, 7
    %v981 = vsub.s32 0, %v980
    %v982 = vrot.slane %v977, %v981
    %v983 = vlaneseq
    %v984 = vshrl.u32 %v983, 7
    %v985 = vsub.s32 1, %v984
    %v986 = vrot.slane %v977, %v985
    %v1085 = vunpack.c.l.b16 %v881
    %v1086 = vunpack.c.h.b16 %v881
    %v1087 = vunpack.c.l.b16 %v882
    %v1088 = vunpack.c.h.b16 %v882
    %v1089 = vunpack.c.l.b16 %v883
    %v1090 = vunpack.c.h.b16 %v883
    %v1091 = vunpack.c.l.b16 %v884
    %v1092 = vunpack.c.h.b16 %v884
    %v1093 = vunpack.c.l.b16 %v885
    %v1094 = vunpack.c.h.b16 %v885
    %v1095 = vunpack.c.l.b16 %v886
    %v1096 = vunpack.c.h.b16 %v886
    %v1097 = vunpack.c.l.b16 %v887
    %v1098 = vunpack.c.h.b16 %v887
    %v1099 = vunpack.c.l.b16 %v888
    %v1100 = vunpack.c.h.b16 %v888
    %v1101 = vunpack.c.l.b16 %v889
    %v1102 = vunpack.c.h.b16 %v889
    %v1103 = vunpack.c.l.b16 %v890
    %v1104 = vunpack.c.h.b16 %v890
    %v1105 = vunpack.c.l.b16 %v891
    %v1106 = vunpack.c.h.b16 %v891
    %v1107 = vunpack.c.l.b16 %v892
    %v1108 = vunpack.c.h.b16 %v892
    %v1109 = vunpack.c.l.b16 %v893
    %v1110 = vunpack.c.h.b16 %v893
    %v1111 = vunpack.c.l.b16 %v894
    %v1112 = vunpack.c.h.b16 %v894
    %v1113 = vunpack.c.l.b16 %v895
    %v1114 = vunpack.c.h.b16 %v895
    %v1115 = vunpack.c.l.b16 %v896
    %v1116 = vunpack.c.h.b16 %v896
    %v1117 = vunpack.c.l.b16 %v897
    %v1118 = vunpack.c.h.b16 %v897
    %v1119 = vunpack.c.l.b16 %v898
    %v1120 = vunpack.c.h.b16 %v898
    %v1121 = vunpack.c.l.b16 %v899
    %v1122 = vunpack.c.h.b16 %v899
    %v1123 = vunpack.c.l.b16 %v900
    %v1124 = vunpack.c.h.b16 %v900
    %v1125 = vunpack.c.l.b16 %v901
    %v1126 = vunpack.c.h.b16 %v901
    %v1127 = vunpack.c.l.b16 %v902
    %v1128 = vunpack.c.h.b16 %v902
    %v1129 = vunpack.c.l.b16 %v903
    %v1130 = vunpack.c.h.b16 %v903
    %v1131 = vunpack.c.l.b16 %v904
    %v1132 = vunpack.c.h.b16 %v904
    %v1133 = vunpack.c.l.b16 %v905
    %v1134 = vunpack.c.h.b16 %v905
    %v1135 = vunpack.c.l.b16 %v906
    %v1136 = vunpack.c.h.b16 %v906
    %v1137 = vunpack.c.l.b16 %v907
    %v1138 = vunpack.c.h.b16 %v907
    %v1139 = vunpack.c.l.b16 %v908
    %v1140 = vunpack.c.h.b16 %v908
    %v1141 = vunpack.c.l.b16 %v909
    %v1142 = vunpack.c.h.b16 %v909
    %v1143 = vunpack.c.l.b16 %v910
    %v1144 = vunpack.c.h.b16 %v910
    %v1145 = vunpack.c.l.b16 %v911
    %v1146 = vunpack.c.h.b16 %v911
    %v1147 = vunpack.c.l.b16 %v912
    %v1148 = vunpack.c.h.b16 %v912
    %v1149 = vunpack.c.l.b16 %v913
    %v1150 = vunpack.c.h.b16 %v913
    %v1151 = vunpack.c.l.b16 %v914
    %v1152 = vunpack.c.h.b16 %v914
    %v1153 = vunpack.c.l.b16 %v915
    %v1154 = vunpack.c.h.b16 %v915
    %v1155 = vunpack.c.l.b16 %v916
    %v1156 = vunpack.c.h.b16 %v916
    %v1157 = vunpack.c.l.b16 %v917
    %v1158 = vunpack.c.h.b16 %v917
    %v1159 = vunpack.c.l.b16 %v918
    %v1160 = vunpack.c.h.b16 %v918
    %v1161 = vunpack.c.l.b16 %v919
    %v1162 = vunpack.c.h.b16 %v919
    %v1163 = vunpack.c.l.b16 %v920
    %v1164 = vunpack.c.h.b16 %v920
    %v1165 = vunpack.c.l.b16 %v921
    %v1166 = vunpack.c.h.b16 %v921
    %v1167 = vunpack.c.l.b16 %v922
    %v1168 = vunpack.c.h.b16 %v922
    %v1169 = vunpack.c.l.b16 %v923
    %v1170 = vunpack.c.h.b16 %v923
    %v1171 = vunpack.c.l.b16 %v924
    %v1172 = vunpack.c.h.b16 %v924
    %v1173 = vunpack.c.l.b16 %v925
    %v1174 = vunpack.c.h.b16 %v925
    %v1175 = vunpack.c.l.b16 %v926
    %v1176 = vunpack.c.h.b16 %v926
    %v1177 = vunpack.c.l.b16 %v927
    %v1178 = vunpack.c.h.b16 %v927
    %v1179 = vunpack.c.l.b16 %v928
    %v1180 = vunpack.c.h.b16 %v928
    %v1181 = vunpack.c.l.b16 %v929
    %v1182 = vunpack.c.h.b16 %v929
    %v1183 = vunpack.c.l.b16 %v930
    %v1184 = vunpack.c.h.b16 %v930
    %v1185 = vunpack.c.l.b16 %v931
    %v1186 = vunpack.c.h.b16 %v931
    %v1187 = vunpack.c.l.b16 %v932
    %v1188 = vunpack.c.h.b16 %v932
    %v1189 = vunpack.c.l.b16 %v933
    %v1190 = vunpack.c.h.b16 %v933
    %v1191 = vunpack.c.l.b16 %v934
    %v1192 = vunpack.c.h.b16 %v934
    %v1193 = vunpack.c.l.b16 %v935
    %v1194 = vunpack.c.h.b16 %v935
    %v1195 = vunpack.c.l.b16 %v936
    %v1196 = vunpack.c.h.b16 %v936
    %v1197 = vunpack.c.l.b16 %v937
    %v1198 = vunpack.c.h.b16 %v937
    %v1199 = vunpack.c.l.b16 %v938
    %v1200 = vunpack.c.h.b16 %v938
    %v1201 = vunpack.c.l.b16 %v939
    %v1202 = vunpack.c.h.b16 %v939
    %v1203 = vunpack.c.l.b16 %v940
    %v1204 = vunpack.c.h.b16 %v940
    %v1205 = vunpack.c.l.b16 %v941
    %v1206 = vunpack.c.h.b16 %v941
    %v1207 = vunpack.c.l.b16 %v942
    %v1208 = vunpack.c.h.b16 %v942
    %v1209 = vunpack.c.l.b16 %v943
    %v1210 = vunpack.c.h.b16 %v943
    %v1211 = vunpack.c.l.b16 %v944
    %v1212 = vunpack.c.h.b16 %v944
    %v1213 = vunpack.c.l.b16 %v945
    %v1214 = vunpack.c.h.b16 %v945
    %v1215 = vunpack.c.l.b16 %v946
    %v1216 = vunpack.c.h.b16 %v946
    %v1217 = vunpack.c.l.b16 %v947
    %v1218 = vunpack.c.h.b16 %v947
    %v1219 = vunpack.c.l.b16 %v948
    %v1220 = vunpack.c.h.b16 %v948
    %v1221 = vunpack.c.l.b16 %v949
    %v1222 = vunpack.c.h.b16 %v949
    %v1223 = vunpack.c.l.b16 %v950
    %v1224 = vunpack.c.h.b16 %v950
    %v1225 = vunpack.c.l.b16 %v951
    %v1226 = vunpack.c.h.b16 %v951
    %v1227 = vunpack.c.l.b16 %v952
    %v1228 = vunpack.c.h.b16 %v952
    %v1229 = vunpack.c.l.b16 %v953
    %v1230 = vunpack.c.h.b16 %v953
    %v1231 = vunpack.c.l.b16 %v954
    %v1232 = vunpack.c.h.b16 %v954
    %v1233 = vunpack.c.l.b16 %v955
    %v1234 = vunpack.c.h.b16 %v955
    %v1235 = vunpack.c.l.b16 %v956
    %v1236 = vunpack.c.h.b16 %v956
    %v1237 = vunpack.c.l.b16 %v957
    %v1238 = vunpack.c.h.b16 %v957
    %v1239 = vunpack.c.l.b16 %v958
    %v1240 = vunpack.c.h.b16 %v958
    %v1241 = vunpack.c.l.b16 %v959
    %v1242 = vunpack.c.h.b16 %v959
    %v1243 = vunpack.c.l.b16 %v960
    %v1244 = vunpack.c.h.b16 %v960
    %v1245 = vunpack.c.l.b16 %v961
    %v1246 = vunpack.c.h.b16 %v961
    %v1247 = vunpack.c.l.b16 %v962
    %v1248 = vunpack.c.h.b16 %v962
    %v1249 = vunpack.c.l.b16 %v963
    %v1250 = vunpack.c.h.b16 %v963
    %v1251 = vunpack.c.l.b16 %v964
    %v1252 = vunpack.c.h.b16 %v964
    %v1253 = vunpack.c.l.b16 %v965
    %v1254 = vunpack.c.h.b16 %v965
    %v1255 = vunpack.c.l.b16 %v966
    %v1256 = vunpack.c.h.b16 %v966
    %v1257 = vunpack.c.l.b16 %v967
    %v1258 = vunpack.c.h.b16 %v967
    %v1259 = vunpack.c.l.b16 %v968
    %v1260 = vunpack.c.h.b16 %v968
    %v1261 = vunpack.c.l.b16 %v969
    %v1262 = vunpack.c.h.b16 %v969
    %v1263 = vunpack.c.l.b16 %v970
    %v1264 = vunpack.c.h.b16 %v970
    %v1265 = vunpack.c.l.b16 %v971
    %v1266 = vunpack.c.h.b16 %v971
    %v1267 = vunpack.c.l.b16 %v972
    %v1268 = vunpack.c.h.b16 %v972
    %v1269 = vunpack.c.l.b16 %v973
    %v1270 = vunpack.c.h.b16 %v973
    %v1271 = vunpack.c.l.b16 %v974
    %v1272 = vunpack.c.h.b16 %v974
    %v1273 = vunpack.c.l.b16 %v975
    %v1274 = vunpack.c.h.b16 %v975
    %v1275 = vunpack.c.l.b16 %v976
    %v1276 = vunpack.c.h.b16 %v976
    %v1277 = vpack.c.b16 %v1087, %v1085
    %v1278 = vpack.c.b16 %v1088, %v1086
    %v1279 = vpack.c.b16 %v1091, %v1089
    %v1280 = vpack.c.b16 %v1092, %v1090
    %v1281 = vpack.c.b16 %v1095, %v1093
    %v1282 = vpack.c.b16 %v1096, %v1094
    %v1283 = vpack.c.b16 %v1099, %v1097
    %v1284 = vpack.c.b16 %v1100, %v1098
    %v1285 = vpack.c.b16 %v1103, %v1101
    %v1286 = vpack.c.b16 %v1104, %v1102
    %v1287 = vpack.c.b16 %v1107, %v1105
    %v1288 = vpack.c.b16 %v1108, %v1106
    %v1289 = vpack.c.b16 %v1111, %v1109
    %v1290 = vpack.c.b16 %v1112, %v1110
    %v1291 = vpack.c.b16 %v1115, %v1113
    %v1292 = vpack.c.b16 %v1116, %v1114
    %v1293 = vpack.c.b16 %v1119, %v1117
    %v1294 = vpack.c.b16 %v1120, %v1118
    %v1295 = vpack.c.b16 %v1123, %v1121
    %v1296 = vpack.c.b16 %v1124, %v1122
    %v1297 = vpack.c.b16 %v1127, %v1125
    %v1298 = vpack.c.b16 %v1128, %v1126
    %v1299 = vpack.c.b16 %v1131, %v1129
    %v1300 = vpack.c.b16 %v1132, %v1130
    %v1301 = vpack.c.b16 %v1135, %v1133
    %v1302 = vpack.c.b16 %v1136, %v1134
    %v1303 = vpack.c.b16 %v1139, %v1137
    %v1304 = vpack.c.b16 %v1140, %v1138
    %v1305 = vpack.c.b16 %v1143, %v1141
    %v1306 = vpack.c.b16 %v1144, %v1142
    %v1307 = vpack.c.b16 %v1147, %v1145
    %v1308 = vpack.c.b16 %v1148, %v1146
    %v1309 = vpack.c.b16 %v1151, %v1149
    %v1310 = vpack.c.b16 %v1152, %v1150
    %v1311 = vpack.c.b16 %v1155, %v1153
    %v1312 = vpack.c.b16 %v1156, %v1154
    %v1313 = vpack.c.b16 %v1159, %v1157
    %v1314 = vpack.c.b16 %v1160, %v1158
    %v1315 = vpack.c.b16 %v1163, %v1161
    %v1316 = vpack.c.b16 %v1164, %v1162
    %v1317 = vpack.c.b16 %v1167, %v1165
    %v1318 = vpack.c.b16 %v1168, %v1166
    %v1319 = vpack.c.b16 %v1171, %v1169
    %v1320 = vpack.c.b16 %v1172, %v1170
    %v1321 = vpack.c.b16 %v1175, %v1173
    %v1322 = vpack.c.b16 %v1176, %v1174
    %v1323 = vpack.c.b16 %v1179, %v1177
    %v1324 = vpack.c.b16 %v1180, %v1178
    %v1325 = vpack.c.b16 %v1183, %v1181
    %v1326 = vpack.c.b16 %v1184, %v1182
    %v1327 = vpack.c.b16 %v1187, %v1185
    %v1328 = vpack.c.b16 %v1188, %v1186
    %v1329 = vpack.c.b16 %v1191, %v1189
    %v1330 = vpack.c.b16 %v1192, %v1190
    %v1331 = vpack.c.b16 %v1195, %v1193
    %v1332 = vpack.c.b16 %v1196, %v1194
    %v1333 = vpack.c.b16 %v1199, %v1197
    %v1334 = vpack.c.b16 %v1200, %v1198
    %v1335 = vpack.c.b16 %v1203, %v1201
    %v1336 = vpack.c.b16 %v1204, %v1202
    %v1337 = vpack.c.b16 %v1207, %v1205
    %v1338 = vpack.c.b16 %v1208, %v1206
    %v1339 = vpack.c.b16 %v1211, %v1209
    %v1340 = vpack.c.b16 %v1212, %v1210
    %v1341 = vpack.c.b16 %v1215, %v1213
    %v1342 = vpack.c.b16 %v1216, %v1214
    %v1343 = vpack.c.b16 %v1219, %v1217
    %v1344 = vpack.c.b16 %v1220, %v1218
    %v1345 = vpack.c.b16 %v1223, %v1221
    %v1346 = vpack.c.b16 %v1224, %v1222
    %v1347 = vpack.c.b16 %v1227, %v1225
    %v1348 = vpack.c.b16 %v1228, %v1226
    %v1349 = vpack.c.b16 %v1231, %v1229
    %v1350 = vpack.c.b16 %v1232, %v1230
    %v1351 = vpack.c.b16 %v1235, %v1233
    %v1352 = vpack.c.b16 %v1236, %v1234
    %v1353 = vpack.c.b16 %v1239, %v1237
    %v1354 = vpack.c.b16 %v1240, %v1238
    %v1355 = vpack.c.b16 %v1243, %v1241
    %v1356 = vpack.c.b16 %v1244, %v1242
    %v1357 = vpack.c.b16 %v1247, %v1245
    %v1358 = vpack.c.b16 %v1248, %v1246
    %v1359 = vpack.c.b16 %v1251, %v1249
    %v1360 = vpack.c.b16 %v1252, %v1250
    %v1361 = vpack.c.b16 %v1255, %v1253
    %v1362 = vpack.c.b16 %v1256, %v1254
    %v1363 = vpack.c.b16 %v1259, %v1257
    %v1364 = vpack.c.b16 %v1260, %v1258
    %v1365 = vpack.c.b16 %v1263, %v1261
    %v1366 = vpack.c.b16 %v1264, %v1262
    %v1367 = vpack.c.b16 %v1267, %v1265
    %v1368 = vpack.c.b16 %v1268, %v1266
    %v1369 = vpack.c.b16 %v1271, %v1269
    %v1370 = vpack.c.b16 %v1272, %v1270
    %v1371 = vpack.c.b16 %v1275, %v1273
    %v1372 = vpack.c.b16 %v1276, %v1274
    %1469 = vmatprep.subr.bf16.mxu0 %v1278
    %1470 = vmatpush1.bf16.msra.mxu0 %v1277
    %1471 = vmatprep.subr.bf16.mxu0 %v1280
    %1472 = vmatpush1.bf16.msra.mxu0 %v1279
    %1473 = vmatprep.subr.bf16.mxu0 %v1282
    %1474 = vmatpush1.bf16.msra.mxu0 %v1281
    %1475 = vmatprep.subr.bf16.mxu0 %v1284
    %1476 = vmatpush1.bf16.msra.mxu0 %v1283
    %1477 = vmatprep.subr.bf16.mxu0 %v1286
    %1478 = vmatpush1.bf16.msra.mxu0 %v1285
    %1479 = vmatprep.subr.bf16.mxu0 %v1288
    %1480 = vmatpush1.bf16.msra.mxu0 %v1287
    %1481 = vmatprep.subr.bf16.mxu0 %v1290
    %1482 = vmatpush1.bf16.msra.mxu0 %v1289
    %1483 = vmatprep.subr.bf16.mxu0 %v1292
    %1484 = vmatpush1.bf16.msra.mxu0 %v1291
    %1485 = vmatprep.subr.bf16.mxu0 %v1294
    %1486 = vmatpush1.bf16.msra.mxu0 %v1293
    %1487 = vmatprep.subr.bf16.mxu0 %v1296
    %1488 = vmatpush1.bf16.msra.mxu0 %v1295
    %1489 = vmatprep.subr.bf16.mxu0 %v1298
    %1490 = vmatpush1.bf16.msra.mxu0 %v1297
    %1491 = vmatprep.subr.bf16.mxu0 %v1300
    %1492 = vmatpush1.bf16.msra.mxu0 %v1299
    %1493 = vmatprep.subr.bf16.mxu0 %v1302
    %1494 = vmatpush1.bf16.msra.mxu0 %v1301
    %1495 = vmatprep.subr.bf16.mxu0 %v1304
    %1496 = vmatpush1.bf16.msra.mxu0 %v1303
    %1497 = vmatprep.subr.bf16.mxu0 %v1306
    %1498 = vmatpush1.bf16.msra.mxu0 %v1305
    %1499 = vmatprep.subr.bf16.mxu0 %v1308
    %1500 = vmatpush1.bf16.msra.mxu0 %v1307
    %1501 = vmatprep.mubr.bf16.mxu0 %v870
    %1502 = vmatmul.mubr.bf16.gmra.mrb[0].mxu0 %v869
    %v1503 = vpop.f32.mrb[0].mxu0
    %v1504 = vadd.f32 %v982, %v1503
    %v1505 = vpop.f32.mrb[0].mxu0
    %v1506 = vadd.f32 %v986, %v1505
    %v1507 = vpop.f32.mrb[0].mxu0
    %v1508 = vadd.f32 %v982, %v1507
    %v1509 = vpop.f32.mrb[0].mxu0
    %v1510 = vadd.f32 %v986, %v1509
    %1511 = vmatprep.mubr.bf16.mxu0 %v872
    %1512 = vmatmul.mubr.bf16.gmra.mrb[0].mxu0 %v871
    %v1513 = vpop.f32.mrb[0].mxu0
    %v1514 = vadd.f32 %v982, %v1513
    %v1515 = vpop.f32.mrb[0].mxu0
    %v1516 = vadd.f32 %v986, %v1515
    %v1517 = vpop.f32.mrb[0].mxu0
    %v1518 = vadd.f32 %v982, %v1517
    %v1519 = vpop.f32.mrb[0].mxu0
    %v1520 = vadd.f32 %v986, %v1519
    %1521 = vdwg.mxu0
    %1522 = vmatprep.subr.bf16.mxu0 %v1310
    %1523 = vmatpush1.bf16.msra.mxu0 %v1309
    %1524 = vmatprep.subr.bf16.mxu0 %v1312
    %1525 = vmatpush1.bf16.msra.mxu0 %v1311
    %1526 = vmatprep.subr.bf16.mxu0 %v1314
    %1527 = vmatpush1.bf16.msra.mxu0 %v1313
    %1528 = vmatprep.subr.bf16.mxu0 %v1316
    %1529 = vmatpush1.bf16.msra.mxu0 %v1315
    %1530 = vmatprep.subr.bf16.mxu0 %v1318
    %1531 = vmatpush1.bf16.msra.mxu0 %v1317
    %1532 = vmatprep.subr.bf16.mxu0 %v1320
    %1533 = vmatpush1.bf16.msra.mxu0 %v1319
    %1534 = vmatprep.subr.bf16.mxu0 %v1322
    %1535 = vmatpush1.bf16.msra.mxu0 %v1321
    %1536 = vmatprep.subr.bf16.mxu0 %v1324
    %1537 = vmatpush1.bf16.msra.mxu0 %v1323
    %1538 = vmatprep.subr.bf16.mxu0 %v1326
    %1539 = vmatpush1.bf16.msra.mxu0 %v1325
    %1540 = vmatprep.subr.bf16.mxu0 %v1328
    %1541 = vmatpush1.bf16.msra.mxu0 %v1327
    %1542 = vmatprep.subr.bf16.mxu0 %v1330
    %1543 = vmatpush1.bf16.msra.mxu0 %v1329
    %1544 = vmatprep.subr.bf16.mxu0 %v1332
    %1545 = vmatpush1.bf16.msra.mxu0 %v1331
    %1546 = vmatprep.subr.bf16.mxu0 %v1334
    %1547 = vmatpush1.bf16.msra.mxu0 %v1333
    %1548 = vmatprep.subr.bf16.mxu0 %v1336
    %1549 = vmatpush1.bf16.msra.mxu0 %v1335
    %1550 = vmatprep.subr.bf16.mxu0 %v1338
    %1551 = vmatpush1.bf16.msra.mxu0 %v1337
    %1552 = vmatprep.subr.bf16.mxu0 %v1340
    %1553 = vmatpush1.bf16.msra.mxu0 %v1339
    %1554 = vmatprep.mubr.bf16.mxu0 %v874
    %1555 = vmatmul.mubr.bf16.gmra.mrb[0].mxu0 %v873
    %v1556 = vpop.f32.mrb[0].mxu0
    %v1557 = vadd.f32 %v1504, %v1556
    %v1558 = vpop.f32.mrb[0].mxu0
    %v1559 = vadd.f32 %v1506, %v1558
    %v1560 = vpop.f32.mrb[0].mxu0
    %v1561 = vadd.f32 %v1508, %v1560
    %v1562 = vpop.f32.mrb[0].mxu0
    %v1563 = vadd.f32 %v1510, %v1562
    %1564 = vmatprep.mubr.bf16.mxu0 %v876
    %1565 = vmatmul.mubr.bf16.gmra.mrb[0].mxu0 %v875
    %v1566 = vpop.f32.mrb[0].mxu0
    %v1567 = vadd.f32 %v1514, %v1566
    %v1568 = vpop.f32.mrb[0].mxu0
    %v1569 = vadd.f32 %v1516, %v1568
    %v1570 = vpop.f32.mrb[0].mxu0
    %v1571 = vadd.f32 %v1518, %v1570
    %v1572 = vpop.f32.mrb[0].mxu0
    %v1573 = vadd.f32 %v1520, %v1572
    %1574 = vdwg.mxu0
    %1575 = vmatprep.subr.bf16.mxu0 %v1342
    %1576 = vmatpush1.bf16.msra.mxu0 %v1341
    %1577 = vmatprep.subr.bf16.mxu0 %v1344
    %1578 = vmatpush1.bf16.msra.mxu0 %v1343
    %1579 = vmatprep.subr.bf16.mxu0 %v1346
    %1580 = vmatpush1.bf16.msra.mxu0 %v1345
    %1581 = vmatprep.subr.bf16.mxu0 %v1348
    %1582 = vmatpush1.bf16.msra.mxu0 %v1347
    %1583 = vmatprep.subr.bf16.mxu0 %v1350
    %1584 = vmatpush1.bf16.msra.mxu0 %v1349
    %1585 = vmatprep.subr.bf16.mxu0 %v1352
    %1586 = vmatpush1.bf16.msra.mxu0 %v1351
    %1587 = vmatprep.subr.bf16.mxu0 %v1354
    %1588 = vmatpush1.bf16.msra.mxu0 %v1353
    %1589 = vmatprep.subr.bf16.mxu0 %v1356
    %1590 = vmatpush1.bf16.msra.mxu0 %v1355
    %1591 = vmatprep.subr.bf16.mxu0 %v1358
    %1592 = vmatpush1.bf16.msra.mxu0 %v1357
    %1593 = vmatprep.subr.bf16.mxu0 %v1360
    %1594 = vmatpush1.bf16.msra.mxu0 %v1359
    %1595 = vmatprep.subr.bf16.mxu0 %v1362
    %1596 = vmatpush1.bf16.msra.mxu0 %v1361
    %1597 = vmatprep.subr.bf16.mxu0 %v1364
    %1598 = vmatpush1.bf16.msra.mxu0 %v1363
    %1599 = vmatprep.subr.bf16.mxu0 %v1366
    %1600 = vmatpush1.bf16.msra.mxu0 %v1365
    %1601 = vmatprep.subr.bf16.mxu0 %v1368
    %1602 = vmatpush1.bf16.msra.mxu0 %v1367
    %1603 = vmatprep.subr.bf16.mxu0 %v1370
    %1604 = vmatpush1.bf16.msra.mxu0 %v1369
    %1605 = vmatprep.subr.bf16.mxu0 %v1372
    %1606 = vmatpush1.bf16.msra.mxu0 %v1371
    %1607 = vmatprep.mubr.bf16.mxu0 %v878
    %1608 = vmatmul.mubr.bf16.gmra.mrb[0].mxu0 %v877
    %v1609 = vpop.f32.mrb[0].mxu0
    %v1610 = vadd.f32 %v1557, %v1609
    %v1611 = vpop.f32.mrb[0].mxu0
    %v1612 = vadd.f32 %v1559, %v1611
    %v1613 = vpop.f32.mrb[0].mxu0
    %v1614 = vadd.f32 %v1561, %v1613
    %v1615 = vpop.f32.mrb[0].mxu0
    %v1616 = vadd.f32 %v1563, %v1615
    %1617 = vmatprep.mubr.bf16.mxu0 %v880
    %1618 = vmatmul.mubr.bf16.gmra.mrb[0].mxu0 %v879
    %v1619 = vpop.f32.mrb[0].mxu0
    %v1620 = vadd.f32 %v1567, %v1619
    %v1621 = vpop.f32.mrb[0].mxu0
    %v1622 = vadd.f32 %v1569, %v1621
    %v1623 = vpop.f32.mrb[0].mxu0
    %v1624 = vadd.f32 %v1571, %v1623
    %v1625 = vpop.f32.mrb[0].mxu0
    %v1626 = vadd.f32 %v1573, %v1625
    %1627 = vdwg.mxu0
    %vm1628 = vcmp.ge.f32.partialorder %v1610, 0.0
    %vm1629 = vcmp.ge.f32.partialorder %v1612, 0.0
    %vm1630 = vcmp.ge.f32.partialorder %v1614, 0.0
    %vm1631 = vcmp.ge.f32.partialorder %v1616, 0.0
    %vm1632 = vcmp.ge.f32.partialorder %v1620, 0.0
    %vm1633 = vcmp.ge.f32.partialorder %v1622, 0.0
    %vm1634 = vcmp.ge.f32.partialorder %v1624, 0.0
    %vm1635 = vcmp.ge.f32.partialorder %v1626, 0.0
    %v1636 = vld [vmem:[%s9] sm:$0x3]
    %v1638 = vlaneseq
    %v1639 = vshrl.u32 %v1638, 7
    %v1640 = vsub.s32 0, %v1639
    %v1641 = vrot.slane %v1636, %v1640
    %v1642 = vlaneseq
    %v1643 = vshrl.u32 %v1642, 7
    %v1644 = vsub.s32 1, %v1643
    %v1645 = vrot.slane %v1636, %v1644
    %v1648 = vmul.f32 %v1641, %v1610
    %v1649 = vmul.f32 %v1645, %v1612
    %v1650 = vmul.f32 %v1641, %v1614
    %v1651 = vmul.f32 %v1645, %v1616
    %v1652 = vmul.f32 %v1641, %v1620
    %v1653 = vmul.f32 %v1645, %v1622
    %v1654 = vmul.f32 %v1641, %v1624
    %v1655 = vmul.f32 %v1645, %v1626
    %v1656 = vsel %vm1628, %v1610, %v1648
    %v1657 = vsel %vm1629, %v1612, %v1649
    %v1658 = vsel %vm1630, %v1614, %v1650
    %v1659 = vsel %vm1631, %v1616, %v1651
    %v1660 = vsel %vm1632, %v1620, %v1652
    %v1661 = vsel %vm1633, %v1622, %v1653
    %v1662 = vsel %vm1634, %v1624, %v1654
    %v1663 = vsel %vm1635, %v1626, %v1655
    %1664 = vst [vmem:[#allocation11] sm:$0xff] %v1656
    %1665 = vst [vmem:[#allocation11 + $0x8] sm:$0xff] %v1657
    %1666 = vst [vmem:[#allocation11 + $0x10] sm:$0xff] %v1658
    %1667 = vst [vmem:[#allocation11 + $0x18] sm:$0xff] %v1659
    %1668 = vst [vmem:[#allocation11 + $0x20] sm:$0xff] %v1660
    %1669 = vst [vmem:[#allocation11 + $0x28] sm:$0xff] %v1661
    %1670 = vst [vmem:[#allocation11 + $0x30] sm:$0xff] %v1662
    %1671 = vst [vmem:[#allocation11 + $0x38] sm:$0xff] %v1663
    // Predicated region
    $region66: #{tpu_custom_call.1} parent=1 // pred_check
      _
    $region67: #{tpu_custom_call.1} parent=1 // pred_check_branch
      %1673 = sbr.rel (0) target = $region69
    $region68: #{tpu_custom_call.1} parent=1 // pred_region
      %s1675 = ssub.s32 1024, 1024
      %1676 = vsyncadd [#allocation4], %s1675
      %s1677 = sshll.u32 [#allocation11], 4
      %s1678 = int_to_ptr.vmem [resolvable:$true] %s1677
      %1683 = dma.vmem_to_hbm [thread:$0]  %s1678, 1024, %s11, [#allocation4], 256, 256, 16
    $region69: #{tpu_custom_call.1} parent=1 // pred_fallthru
      _
    // Predicated region
    $region70: #{tpu_custom_call.1} parent=1 // pred_check
      _
    $region71: #{tpu_custom_call.1} parent=1 // pred_check_branch
      %1685 = sbr.rel (0) target = $region73
    $region72: #{tpu_custom_call.1} parent=1 // pred_region
      %1686 = dma.done [#allocation4], 1024
    $region73: #{tpu_custom_call.1} parent=1 // pred_fallthru
      _
    %1687 = vsyncpa [#allocation3], 1
    %1688 = vsyncpa [#allocation6], 1
    %1689 = vsyncpa [#allocation9], 1
    %1690 = vsyncpa [#allocation4], 1

</llo_original>
